<compile_context>
chip_gen: v5e
topology: v5e:2x2
jax: 0.10.0
libtpu: 0.0.40
codegen_flags: <defaults>
</compile_context>

<pallas_src>
import functools
import numpy as np
import jax
import jax.numpy as jnp
from jax.experimental import pallas as pl
from jax.experimental.pallas import tpu as pltpu

VMEM_SPEC = pl.BlockSpec(memory_space=pltpu.MemorySpace.VMEM)
SMEM_SPEC = pl.BlockSpec(memory_space=pltpu.MemorySpace.SMEM)


def _elu(x):
    return jnp.where(x > 0, x, jnp.exp(jnp.minimum(x, 0.0)) - 1.0)


# ----------------------------- fused Pallas kernel ---------------------------

def _network_kernel(sc_ref,                     # SMEM (num_edges,)  'skip' weights
                    x_ref, a_ref,               # (N,F), (N,N)
                    lin1_w_ref, lin1_b_ref,     # (F,H), (1,H)
                    gnn_w_ref, gnn_b_ref,       # (L,H,H), (L,1,H)
                    fuse_w_ref, fuse_b_ref,     # (L+1,3,H,H), (L+1,3,1,H)  (ffw/k folded)
                    c1w_ref, c1b_ref,           # (H,H), (1,H)
                    c2w_ref, c2b_ref,           # (H,O), (1,O)
                    o_ref,                      # (N,O)
                    *, num_layers):

    def fuse_stage(feats, f, start, k):
        # ScMixedOp over SC_PRIMITIVES=['none','skip']: 'none'->0, 'skip'->sc*x
        s0 = feats[0] * sc_ref[start]
        s_sum = s0
        s_max = s0
        for i in range(1, k):
            si = feats[i] * sc_ref[start + i]
            s_sum = s_sum + si
            s_max = jnp.maximum(s_max, si)
        # LaMixedOp over FF_PRIMITIVES=['sum','mean','max'].  ffw[p] and the 1/k
        # mean scale are pre-folded into fuse_w/fuse_b (valid: ffw>0, k>0), so
        #   out = sum_p relu( relu(agg_p) @ W'_p + b'_p )
        # with relu(mean) realized as relu(sum) feeding the 1/k-scaled weight.
        r_sum = jnp.maximum(s_sum, 0.0)
        r_max = jnp.maximum(s_max, 0.0)
        out = jnp.zeros_like(r_sum)
        for p, r_in in enumerate((r_sum, r_sum, r_max)):   # sum, mean, max
            y = jnp.dot(r_in, fuse_w_ref[f, p],
                        preferred_element_type=jnp.float32) + fuse_b_ref[f, p]
            out = out + jnp.maximum(y, 0.0)
        return out

    # lin1 (+ dropout p=0.0 -> identity)
    feats = [jnp.dot(x_ref[...], lin1_w_ref[...],
                     preferred_element_type=jnp.float32) + lin1_b_ref[...]]

    start = 0
    for layer in range(num_layers):
        k = layer + 1
        tmp = fuse_stage(feats, layer, start, k)          # ScMixedOp + LaMixedOp
        # NaOp('gcn'): elu( A_norm @ (tmp @ W) + b )
        xw = jnp.dot(tmp, gnn_w_ref[layer], preferred_element_type=jnp.float32)
        feats.append(_elu(
            jnp.dot(a_ref[...], xw, preferred_element_type=jnp.float32)
            + gnn_b_ref[layer]))
        start += k

    out = fuse_stage(feats, num_layers, start, num_layers + 1)   # output fuse

    # classifier: Linear -> ReLU -> Linear
    h = jnp.maximum(jnp.dot(out, c1w_ref[...],
                            preferred_element_type=jnp.float32) + c1b_ref[...], 0.0)
    o_ref[...] = (jnp.dot(h, c2w_ref[...],
                          preferred_element_type=jnp.float32) + c2b_ref[...])


# ------------------------------ wrapper --------------------------------------

def network_forward(params, x, a_norm, sc_w, ff_w):
    """Single fused pallas_call mirroring Network.forward_model."""
    num_layers = len(params['gnn'])
    n = x.shape[0]
    out_dim = params['clf'][2].shape[1]
    num_fuse = num_layers + 1

    # Fold DARTS FF mixture weights (softmax -> strictly positive) and the 1/k
    # mean scale (k>0) into the per-primitive LaAggregator linears, once.
    fw = jnp.stack([params['fuse'][f][0] for f in range(num_fuse)], 0)  # (F,3,H,H)
    fb = jnp.stack([params['fuse'][f][1] for f in range(num_fuse)], 0)  # (F,3,H)
    k_vec = jnp.arange(1, num_fuse + 1, dtype=jnp.float32)              # inputs per fuse func
    w_scale = jnp.stack([ff_w[:, 0], ff_w[:, 1] / k_vec, ff_w[:, 2]], axis=1)  # (F,3)
    fuse_w = fw * w_scale[:, :, None, None]                             # (F,3,H,H)
    fuse_b = (fb * ff_w[:, :, None])[:, :, None, :]                     # (F,3,1,H)

    gnn_w = jnp.stack([params['gnn'][l][0] for l in range(num_layers)], 0)             # (L,H,H)
    gnn_b = jnp.stack([params['gnn'][l][1] for l in range(num_layers)], 0)[:, None, :]  # (L,1,H)
    w1, b1, w2, b2 = params['clf']

    kernel = functools.partial(_network_kernel, num_layers=num_layers)
    return pl.pallas_call(
        kernel,
        out_shape=jax.ShapeDtypeStruct((n, out_dim), jnp.float32),
        in_specs=[SMEM_SPEC] + [VMEM_SPEC] * 12,
        out_specs=VMEM_SPEC,
    )(sc_w[:, 1],                       # 'skip' weights; 'none' contributes 0
      x, a_norm,
      params['lin1_w'], params['lin1_b'].reshape(1, -1),
      gnn_w, gnn_b,
      fuse_w, fuse_b,
      w1, b1.reshape(1, -1), w2, b2.reshape(1, -1))


# ------------------------------ reference (float64, numpy) -------------------

def reference_forward_np(params, x, a_norm, sc_w, ff_w):
    f64 = lambda a: np.asarray(a, np.float64)
    relu = lambda v: np.maximum(v, 0.0)
    elu = lambda v: np.where(v > 0, v, np.exp(np.minimum(v, 0.0)) - 1.0)
    x = f64(x); a_norm = f64(a_norm); sc = f64(sc_w); ffw = f64(ff_w)

    def fuse_ref(xs, scv, ffv, w, b):
        sc_xs = [scv[i] * xs[i] for i in range(len(xs))]
        s_sum = sum(sc_xs)
        s_mean = s_sum / len(xs)
        s_max = sc_xs[0]
        for t in sc_xs[1:]:
            s_max = np.maximum(s_max, t)
        out = 0.0
        for p, agg in enumerate((s_sum, s_mean, s_max)):
            y = relu(agg) @ f64(w[p]) + f64(b[p])
            out = out + ffv[p] * relu(y)
        return out

    num_layers = len(params['gnn'])
    feats = [x @ f64(params['lin1_w']) + f64(params['lin1_b'])]
    start = 0
    for layer in range(num_layers):
        k = layer + 1
        fw, fb = params['fuse'][layer]
        tmp = fuse_ref(feats[:k], sc[start:start + k, 1], ffw[layer], fw, fb)
        gw, gb = params['gnn'][layer]
        feats.append(elu(a_norm @ (tmp @ f64(gw)) + f64(gb)))
        start += k
    fw, fb = params['fuse'][num_layers]
    out = fuse_ref(feats, sc[start:start + num_layers + 1, 1], ffw[num_layers], fw, fb)
    w1, b1, w2, b2 = params['clf']
    return relu(out @ f64(w1) + f64(b1)) @ f64(w2) + f64(b2)


# --------------------------------- main --------------------------------------

if __name__ == "__main__":
    N, IN_DIM, HIDDEN, OUT_DIM = 64, 16, 32, 8
    NUM_LAYERS = 2
    TEMP = 0.5
    NUM_EDGES = (NUM_LAYERS + 2) * (NUM_LAYERS + 1) // 2     # = 6
    NUM_SC_OPS, NUM_FF_OPS = 2, 3

    key = jax.random.PRNGKey(0)
    ks = list(jax.random.split(key, 32))
    nk = lambda: ks.pop()

    # node features
    x = jax.random.normal(nk(), (N, IN_DIM), jnp.float32)

    # simple deterministic graph: ring + a few extra edges -> dense sym-norm adjacency
    src = np.arange(N)
    dst = (src + 1) % N
    extra_src = np.arange(0, N, 7)
    extra_dst = (extra_src + 11) % N
    A = np.zeros((N, N), np.float32)
    A[src, dst] = 1.0; A[dst, src] = 1.0
    A[extra_src, extra_dst] = 1.0; A[extra_dst, extra_src] = 1.0
    A_hat = A + np.eye(N, dtype=np.float32)
    deg = A_hat.sum(-1)
    dinv = 1.0 / np.sqrt(deg)
    a_norm = jnp.asarray(dinv[:, None] * A_hat * dinv[None, :], jnp.float32)

    # parameters (deterministic)
    params = {
        'lin1_w': 0.1 * jax.random.normal(nk(), (IN_DIM, HIDDEN), jnp.float32),
        'lin1_b': 0.1 * jax.random.normal(nk(), (HIDDEN,), jnp.float32),
        'gnn': [(0.1 * jax.random.normal(nk(), (HIDDEN, HIDDEN), jnp.float32),
                 0.1 * jax.random.normal(nk(), (HIDDEN,), jnp.float32))
                for _ in range(NUM_LAYERS)],
        'fuse': [(0.1 * jax.random.normal(nk(), (NUM_FF_OPS, HIDDEN, HIDDEN), jnp.float32),
                  0.1 * jax.random.normal(nk(), (NUM_FF_OPS, HIDDEN), jnp.float32))
                 for _ in range(NUM_LAYERS + 1)],
        'clf': (0.1 * jax.random.normal(nk(), (HIDDEN, HIDDEN), jnp.float32),
                0.1 * jax.random.normal(nk(), (HIDDEN,), jnp.float32),
                0.1 * jax.random.normal(nk(), (HIDDEN, OUT_DIM), jnp.float32),
                0.1 * jax.random.normal(nk(), (OUT_DIM,), jnp.float32)),
    }

    # architecture alphas -> DARTS mixture weights: softmax(alpha / temp)
    sc_alphas = 0.001 * jax.random.normal(nk(), (NUM_EDGES, NUM_SC_OPS), jnp.float32)
    ff_alphas = 0.001 * jax.random.normal(nk(), (NUM_LAYERS + 1, NUM_FF_OPS), jnp.float32)
    sc_w = jax.nn.softmax(sc_alphas / TEMP, axis=-1)
    ff_w = jax.nn.softmax(ff_alphas / TEMP, axis=-1)

    out = network_forward(params, x, a_norm, sc_w, ff_w)
    out = jax.block_until_ready(out)

    ref = reference_forward_np(params, x, a_norm, sc_w, ff_w)
    assert out.shape == (N, OUT_DIM)
    assert bool(jnp.all(jnp.isfinite(out)))
    np.testing.assert_allclose(np.asarray(out, np.float64), ref, rtol=2e-3, atol=2e-4)
    print("KERNEL_OK")
</pallas_src>

<mosaic_0001>
module attributes {stable_mosaic.version = 11 : i64} {
  func.func @_network_kernel(%arg0: memref<6xf32, #tpu.memory_space<smem>>, %arg1: memref<64x16xf32, #tpu.memory_space<vmem>>, %arg2: memref<64x64xf32, #tpu.memory_space<vmem>>, %arg3: memref<16x32xf32, #tpu.memory_space<vmem>>, %arg4: memref<1x32xf32, #tpu.memory_space<vmem>>, %arg5: memref<2x32x32xf32, #tpu.memory_space<vmem>>, %arg6: memref<2x1x32xf32, #tpu.memory_space<vmem>>, %arg7: memref<3x3x32x32xf32, #tpu.memory_space<vmem>>, %arg8: memref<3x3x1x32xf32, #tpu.memory_space<vmem>>, %arg9: memref<32x32xf32, #tpu.memory_space<vmem>>, %arg10: memref<1x32xf32, #tpu.memory_space<vmem>>, %arg11: memref<32x8xf32, #tpu.memory_space<vmem>>, %arg12: memref<1x8xf32, #tpu.memory_space<vmem>>, %arg13: memref<64x8xf32, #tpu.memory_space<vmem>>) attributes {dimension_semantics = [], scalar_prefetch = 0 : i64, scratch_operands = 0 : i64, tpu.core_type = #tpu.core_type<tc>} {
    %c0 = arith.constant 0 : index
    %c0_0 = arith.constant 0 : index
    %0 = vector.load %arg1[%c0, %c0_0] : memref<64x16xf32, #tpu.memory_space<vmem>>, vector<64x16xf32>
    %c0_1 = arith.constant 0 : index
    %c0_2 = arith.constant 0 : index
    %1 = vector.load %arg3[%c0_1, %c0_2] : memref<16x32xf32, #tpu.memory_space<vmem>>, vector<16x32xf32>
    %cst = arith.constant dense<0.000000e+00> : vector<64x32xf32>
    %2 = tpu.matmul %0, %1, %cst {dimension_numbers = #tpu.dot_dimension_numbers<[1], [0], [0], [1], [0, 0, 1, 1], [], []>} : vector<64x16xf32>, vector<16x32xf32>, vector<64x32xf32> -> vector<64x32xf32>
    %c0_3 = arith.constant 0 : index
    %c0_4 = arith.constant 0 : index
    %3 = vector.load %arg4[%c0_3, %c0_4] : memref<1x32xf32, #tpu.memory_space<vmem>>, vector<1x32xf32>
    %4 = vector.broadcast %3 : vector<1x32xf32> to vector<64x32xf32>
    %5 = arith.addf %2, %4 : vector<64x32xf32>
    %c0_5 = arith.constant 0 : index
    %6 = memref.load %arg0[%c0_5] : memref<6xf32, #tpu.memory_space<smem>>
    %7 = vector.broadcast %6 : f32 to vector<64x32xf32>
    %8 = arith.mulf %5, %7 : vector<64x32xf32>
    %cst_6 = arith.constant 0.000000e+00 : f32
    %9 = vector.broadcast %cst_6 : f32 to vector<64x32xf32>
    %10 = arith.maximumf %8, %9 : vector<64x32xf32>
    %cst_7 = arith.constant 0.000000e+00 : f32
    %11 = vector.broadcast %cst_7 : f32 to vector<64x32xf32>
    %12 = arith.maximumf %8, %11 : vector<64x32xf32>
    %cst_8 = arith.constant 0.000000e+00 : f32
    %13 = vector.broadcast %cst_8 : f32 to vector<64x32xf32>
    %c0_9 = arith.constant 0 : index
    %c0_10 = arith.constant 0 : index
    %c0_11 = arith.constant 0 : index
    %c0_12 = arith.constant 0 : index
    %14 = vector.load %arg7[%c0_9, %c0_10, %c0_11, %c0_12] : memref<3x3x32x32xf32, #tpu.memory_space<vmem>>, vector<1x1x32x32xf32>
    %15 = vector.shape_cast %14 : vector<1x1x32x32xf32> to vector<32x32xf32>
    %cst_13 = arith.constant dense<0.000000e+00> : vector<64x32xf32>
    %16 = tpu.matmul %10, %15, %cst_13 {dimension_numbers = #tpu.dot_dimension_numbers<[1], [0], [0], [1], [0, 0, 1, 1], [], []>} : vector<64x32xf32>, vector<32x32xf32>, vector<64x32xf32> -> vector<64x32xf32>
    %c0_14 = arith.constant 0 : index
    %c0_15 = arith.constant 0 : index
    %c0_16 = arith.constant 0 : index
    %c0_17 = arith.constant 0 : index
    %17 = vector.load %arg8[%c0_14, %c0_15, %c0_16, %c0_17] : memref<3x3x1x32xf32, #tpu.memory_space<vmem>>, vector<1x1x1x32xf32>
    %18 = vector.shape_cast %17 : vector<1x1x1x32xf32> to vector<1x32xf32>
    %19 = vector.broadcast %18 : vector<1x32xf32> to vector<64x32xf32>
    %20 = arith.addf %16, %19 : vector<64x32xf32>
    %cst_18 = arith.constant 0.000000e+00 : f32
    %21 = vector.broadcast %cst_18 : f32 to vector<64x32xf32>
    %22 = arith.maximumf %20, %21 : vector<64x32xf32>
    %23 = arith.addf %13, %22 : vector<64x32xf32>
    %c0_19 = arith.constant 0 : index
    %c1 = arith.constant 1 : index
    %c0_20 = arith.constant 0 : index
    %c0_21 = arith.constant 0 : index
    %24 = vector.load %arg7[%c0_19, %c1, %c0_20, %c0_21] : memref<3x3x32x32xf32, #tpu.memory_space<vmem>>, vector<1x1x32x32xf32>
    %25 = vector.shape_cast %24 : vector<1x1x32x32xf32> to vector<32x32xf32>
    %cst_22 = arith.constant dense<0.000000e+00> : vector<64x32xf32>
    %26 = tpu.matmul %10, %25, %cst_22 {dimension_numbers = #tpu.dot_dimension_numbers<[1], [0], [0], [1], [0, 0, 1, 1], [], []>} : vector<64x32xf32>, vector<32x32xf32>, vector<64x32xf32> -> vector<64x32xf32>
    %c0_23 = arith.constant 0 : index
    %c1_24 = arith.constant 1 : index
    %c0_25 = arith.constant 0 : index
    %c0_26 = arith.constant 0 : index
    %27 = vector.load %arg8[%c0_23, %c1_24, %c0_25, %c0_26] : memref<3x3x1x32xf32, #tpu.memory_space<vmem>>, vector<1x1x1x32xf32>
    %28 = vector.shape_cast %27 : vector<1x1x1x32xf32> to vector<1x32xf32>
    %29 = vector.broadcast %28 : vector<1x32xf32> to vector<64x32xf32>
    %30 = arith.addf %26, %29 : vector<64x32xf32>
    %cst_27 = arith.constant 0.000000e+00 : f32
    %31 = vector.broadcast %cst_27 : f32 to vector<64x32xf32>
    %32 = arith.maximumf %30, %31 : vector<64x32xf32>
    %33 = arith.addf %23, %32 : vector<64x32xf32>
    %c0_28 = arith.constant 0 : index
    %c2 = arith.constant 2 : index
    %c0_29 = arith.constant 0 : index
    %c0_30 = arith.constant 0 : index
    %34 = vector.load %arg7[%c0_28, %c2, %c0_29, %c0_30] : memref<3x3x32x32xf32, #tpu.memory_space<vmem>>, vector<1x1x32x32xf32>
    %35 = vector.shape_cast %34 : vector<1x1x32x32xf32> to vector<32x32xf32>
    %cst_31 = arith.constant dense<0.000000e+00> : vector<64x32xf32>
    %36 = tpu.matmul %12, %35, %cst_31 {dimension_numbers = #tpu.dot_dimension_numbers<[1], [0], [0], [1], [0, 0, 1, 1], [], []>} : vector<64x32xf32>, vector<32x32xf32>, vector<64x32xf32> -> vector<64x32xf32>
    %c0_32 = arith.constant 0 : index
    %c2_33 = arith.constant 2 : index
    %c0_34 = arith.constant 0 : index
    %c0_35 = arith.constant 0 : index
    %37 = vector.load %arg8[%c0_32, %c2_33, %c0_34, %c0_35] : memref<3x3x1x32xf32, #tpu.memory_space<vmem>>, vector<1x1x1x32xf32>
    %38 = vector.shape_cast %37 : vector<1x1x1x32xf32> to vector<1x32xf32>
    %39 = vector.broadcast %38 : vector<1x32xf32> to vector<64x32xf32>
    %40 = arith.addf %36, %39 : vector<64x32xf32>
    %cst_36 = arith.constant 0.000000e+00 : f32
    %41 = vector.broadcast %cst_36 : f32 to vector<64x32xf32>
    %42 = arith.maximumf %40, %41 : vector<64x32xf32>
    %43 = arith.addf %33, %42 : vector<64x32xf32>
    %c0_37 = arith.constant 0 : index
    %c0_38 = arith.constant 0 : index
    %c0_39 = arith.constant 0 : index
    %44 = vector.load %arg5[%c0_37, %c0_38, %c0_39] : memref<2x32x32xf32, #tpu.memory_space<vmem>>, vector<1x32x32xf32>
    %45 = vector.shape_cast %44 : vector<1x32x32xf32> to vector<32x32xf32>
    %cst_40 = arith.constant dense<0.000000e+00> : vector<64x32xf32>
    %46 = tpu.matmul %43, %45, %cst_40 {dimension_numbers = #tpu.dot_dimension_numbers<[1], [0], [0], [1], [0, 0, 1, 1], [], []>} : vector<64x32xf32>, vector<32x32xf32>, vector<64x32xf32> -> vector<64x32xf32>
    %c0_41 = arith.constant 0 : index
    %c0_42 = arith.constant 0 : index
    %47 = vector.load %arg2[%c0_41, %c0_42] : memref<64x64xf32, #tpu.memory_space<vmem>>, vector<64x64xf32>
    %cst_43 = arith.constant dense<0.000000e+00> : vector<64x32xf32>
    %48 = tpu.matmul %47, %46, %cst_43 {dimension_numbers = #tpu.dot_dimension_numbers<[1], [0], [0], [1], [0, 0, 1, 1], [], []>} : vector<64x64xf32>, vector<64x32xf32>, vector<64x32xf32> -> vector<64x32xf32>
    %c0_44 = arith.constant 0 : index
    %c0_45 = arith.constant 0 : index
    %c0_46 = arith.constant 0 : index
    %49 = vector.load %arg6[%c0_44, %c0_45, %c0_46] : memref<2x1x32xf32, #tpu.memory_space<vmem>>, vector<1x1x32xf32>
    %50 = vector.shape_cast %49 : vector<1x1x32xf32> to vector<1x32xf32>
    %51 = vector.broadcast %50 : vector<1x32xf32> to vector<64x32xf32>
    %52 = arith.addf %48, %51 : vector<64x32xf32>
    %cst_47 = arith.constant 0.000000e+00 : f32
    %53 = vector.broadcast %cst_47 : f32 to vector<64x32xf32>
    %54 = arith.cmpf ogt, %52, %53 : vector<64x32xf32>
    %cst_48 = arith.constant 0.000000e+00 : f32
    %55 = vector.broadcast %cst_48 : f32 to vector<64x32xf32>
    %56 = arith.minimumf %52, %55 : vector<64x32xf32>
    %57 = math.exp %56 : vector<64x32xf32>
    %cst_49 = arith.constant 1.000000e+00 : f32
    %58 = vector.broadcast %cst_49 : f32 to vector<64x32xf32>
    %59 = arith.subf %57, %58 : vector<64x32xf32>
    %60 = arith.select %54, %52, %59 : vector<64x32xi1>, vector<64x32xf32>
    %c1_50 = arith.constant 1 : index
    %61 = memref.load %arg0[%c1_50] : memref<6xf32, #tpu.memory_space<smem>>
    %62 = vector.broadcast %61 : f32 to vector<64x32xf32>
    %63 = arith.mulf %5, %62 : vector<64x32xf32>
    %c2_51 = arith.constant 2 : index
    %64 = memref.load %arg0[%c2_51] : memref<6xf32, #tpu.memory_space<smem>>
    %65 = vector.broadcast %64 : f32 to vector<64x32xf32>
    %66 = arith.mulf %60, %65 : vector<64x32xf32>
    %67 = arith.addf %63, %66 : vector<64x32xf32>
    %68 = arith.maximumf %63, %66 : vector<64x32xf32>
    %cst_52 = arith.constant 0.000000e+00 : f32
    %69 = vector.broadcast %cst_52 : f32 to vector<64x32xf32>
    %70 = arith.maximumf %67, %69 : vector<64x32xf32>
    %cst_53 = arith.constant 0.000000e+00 : f32
    %71 = vector.broadcast %cst_53 : f32 to vector<64x32xf32>
    %72 = arith.maximumf %68, %71 : vector<64x32xf32>
    %cst_54 = arith.constant 0.000000e+00 : f32
    %73 = vector.broadcast %cst_54 : f32 to vector<64x32xf32>
    %c1_55 = arith.constant 1 : index
    %c0_56 = arith.constant 0 : index
    %c0_57 = arith.constant 0 : index
    %c0_58 = arith.constant 0 : index
    %74 = vector.load %arg7[%c1_55, %c0_56, %c0_57, %c0_58] : memref<3x3x32x32xf32, #tpu.memory_space<vmem>>, vector<1x1x32x32xf32>
    %75 = vector.shape_cast %74 : vector<1x1x32x32xf32> to vector<32x32xf32>
    %cst_59 = arith.constant dense<0.000000e+00> : vector<64x32xf32>
    %76 = tpu.matmul %70, %75, %cst_59 {dimension_numbers = #tpu.dot_dimension_numbers<[1], [0], [0], [1], [0, 0, 1, 1], [], []>} : vector<64x32xf32>, vector<32x32xf32>, vector<64x32xf32> -> vector<64x32xf32>
    %c1_60 = arith.constant 1 : index
    %c0_61 = arith.constant 0 : index
    %c0_62 = arith.constant 0 : index
    %c0_63 = arith.constant 0 : index
    %77 = vector.load %arg8[%c1_60, %c0_61, %c0_62, %c0_63] : memref<3x3x1x32xf32, #tpu.memory_space<vmem>>, vector<1x1x1x32xf32>
    %78 = vector.shape_cast %77 : vector<1x1x1x32xf32> to vector<1x32xf32>
    %79 = vector.broadcast %78 : vector<1x32xf32> to vector<64x32xf32>
    %80 = arith.addf %76, %79 : vector<64x32xf32>
    %cst_64 = arith.constant 0.000000e+00 : f32
    %81 = vector.broadcast %cst_64 : f32 to vector<64x32xf32>
    %82 = arith.maximumf %80, %81 : vector<64x32xf32>
    %83 = arith.addf %73, %82 : vector<64x32xf32>
    %c1_65 = arith.constant 1 : index
    %c1_66 = arith.constant 1 : index
    %c0_67 = arith.constant 0 : index
    %c0_68 = arith.constant 0 : index
    %84 = vector.load %arg7[%c1_65, %c1_66, %c0_67, %c0_68] : memref<3x3x32x32xf32, #tpu.memory_space<vmem>>, vector<1x1x32x32xf32>
    %85 = vector.shape_cast %84 : vector<1x1x32x32xf32> to vector<32x32xf32>
    %cst_69 = arith.constant dense<0.000000e+00> : vector<64x32xf32>
    %86 = tpu.matmul %70, %85, %cst_69 {dimension_numbers = #tpu.dot_dimension_numbers<[1], [0], [0], [1], [0, 0, 1, 1], [], []>} : vector<64x32xf32>, vector<32x32xf32>, vector<64x32xf32> -> vector<64x32xf32>
    %c1_70 = arith.constant 1 : index
    %c1_71 = arith.constant 1 : index
    %c0_72 = arith.constant 0 : index
    %c0_73 = arith.constant 0 : index
    %87 = vector.load %arg8[%c1_70, %c1_71, %c0_72, %c0_73] : memref<3x3x1x32xf32, #tpu.memory_space<vmem>>, vector<1x1x1x32xf32>
    %88 = vector.shape_cast %87 : vector<1x1x1x32xf32> to vector<1x32xf32>
    %89 = vector.broadcast %88 : vector<1x32xf32> to vector<64x32xf32>
    %90 = arith.addf %86, %89 : vector<64x32xf32>
    %cst_74 = arith.constant 0.000000e+00 : f32
    %91 = vector.broadcast %cst_74 : f32 to vector<64x32xf32>
    %92 = arith.maximumf %90, %91 : vector<64x32xf32>
    %93 = arith.addf %83, %92 : vector<64x32xf32>
    %c1_75 = arith.constant 1 : index
    %c2_76 = arith.constant 2 : index
    %c0_77 = arith.constant 0 : index
    %c0_78 = arith.constant 0 : index
    %94 = vector.load %arg7[%c1_75, %c2_76, %c0_77, %c0_78] : memref<3x3x32x32xf32, #tpu.memory_space<vmem>>, vector<1x1x32x32xf32>
    %95 = vector.shape_cast %94 : vector<1x1x32x32xf32> to vector<32x32xf32>
    %cst_79 = arith.constant dense<0.000000e+00> : vector<64x32xf32>
    %96 = tpu.matmul %72, %95, %cst_79 {dimension_numbers = #tpu.dot_dimension_numbers<[1], [0], [0], [1], [0, 0, 1, 1], [], []>} : vector<64x32xf32>, vector<32x32xf32>, vector<64x32xf32> -> vector<64x32xf32>
    %c1_80 = arith.constant 1 : index
    %c2_81 = arith.constant 2 : index
    %c0_82 = arith.constant 0 : index
    %c0_83 = arith.constant 0 : index
    %97 = vector.load %arg8[%c1_80, %c2_81, %c0_82, %c0_83] : memref<3x3x1x32xf32, #tpu.memory_space<vmem>>, vector<1x1x1x32xf32>
    %98 = vector.shape_cast %97 : vector<1x1x1x32xf32> to vector<1x32xf32>
    %99 = vector.broadcast %98 : vector<1x32xf32> to vector<64x32xf32>
    %100 = arith.addf %96, %99 : vector<64x32xf32>
    %cst_84 = arith.constant 0.000000e+00 : f32
    %101 = vector.broadcast %cst_84 : f32 to vector<64x32xf32>
    %102 = arith.maximumf %100, %101 : vector<64x32xf32>
    %103 = arith.addf %93, %102 : vector<64x32xf32>
    %c1_85 = arith.constant 1 : index
    %c0_86 = arith.constant 0 : index
    %c0_87 = arith.constant 0 : index
    %104 = vector.load %arg5[%c1_85, %c0_86, %c0_87] : memref<2x32x32xf32, #tpu.memory_space<vmem>>, vector<1x32x32xf32>
    %105 = vector.shape_cast %104 : vector<1x32x32xf32> to vector<32x32xf32>
    %cst_88 = arith.constant dense<0.000000e+00> : vector<64x32xf32>
    %106 = tpu.matmul %103, %105, %cst_88 {dimension_numbers = #tpu.dot_dimension_numbers<[1], [0], [0], [1], [0, 0, 1, 1], [], []>} : vector<64x32xf32>, vector<32x32xf32>, vector<64x32xf32> -> vector<64x32xf32>
    %c0_89 = arith.constant 0 : index
    %c0_90 = arith.constant 0 : index
    %107 = vector.load %arg2[%c0_89, %c0_90] : memref<64x64xf32, #tpu.memory_space<vmem>>, vector<64x64xf32>
    %cst_91 = arith.constant dense<0.000000e+00> : vector<64x32xf32>
    %108 = tpu.matmul %107, %106, %cst_91 {dimension_numbers = #tpu.dot_dimension_numbers<[1], [0], [0], [1], [0, 0, 1, 1], [], []>} : vector<64x64xf32>, vector<64x32xf32>, vector<64x32xf32> -> vector<64x32xf32>
    %c1_92 = arith.constant 1 : index
    %c0_93 = arith.constant 0 : index
    %c0_94 = arith.constant 0 : index
    %109 = vector.load %arg6[%c1_92, %c0_93, %c0_94] : memref<2x1x32xf32, #tpu.memory_space<vmem>>, vector<1x1x32xf32>
    %110 = vector.shape_cast %109 : vector<1x1x32xf32> to vector<1x32xf32>
    %111 = vector.broadcast %110 : vector<1x32xf32> to vector<64x32xf32>
    %112 = arith.addf %108, %111 : vector<64x32xf32>
    %cst_95 = arith.constant 0.000000e+00 : f32
    %113 = vector.broadcast %cst_95 : f32 to vector<64x32xf32>
    %114 = arith.cmpf ogt, %112, %113 : vector<64x32xf32>
    %cst_96 = arith.constant 0.000000e+00 : f32
    %115 = vector.broadcast %cst_96 : f32 to vector<64x32xf32>
    %116 = arith.minimumf %112, %115 : vector<64x32xf32>
    %117 = math.exp %116 : vector<64x32xf32>
    %cst_97 = arith.constant 1.000000e+00 : f32
    %118 = vector.broadcast %cst_97 : f32 to vector<64x32xf32>
    %119 = arith.subf %117, %118 : vector<64x32xf32>
    %120 = arith.select %114, %112, %119 : vector<64x32xi1>, vector<64x32xf32>
    %c3 = arith.constant 3 : index
    %121 = memref.load %arg0[%c3] : memref<6xf32, #tpu.memory_space<smem>>
    %122 = vector.broadcast %121 : f32 to vector<64x32xf32>
    %123 = arith.mulf %5, %122 : vector<64x32xf32>
    %c4 = arith.constant 4 : index
    %124 = memref.load %arg0[%c4] : memref<6xf32, #tpu.memory_space<smem>>
    %125 = vector.broadcast %124 : f32 to vector<64x32xf32>
    %126 = arith.mulf %60, %125 : vector<64x32xf32>
    %127 = arith.addf %123, %126 : vector<64x32xf32>
    %128 = arith.maximumf %123, %126 : vector<64x32xf32>
    %c5 = arith.constant 5 : index
    %129 = memref.load %arg0[%c5] : memref<6xf32, #tpu.memory_space<smem>>
    %130 = vector.broadcast %129 : f32 to vector<64x32xf32>
    %131 = arith.mulf %120, %130 : vector<64x32xf32>
    %132 = arith.addf %127, %131 : vector<64x32xf32>
    %133 = arith.maximumf %128, %131 : vector<64x32xf32>
    %cst_98 = arith.constant 0.000000e+00 : f32
    %134 = vector.broadcast %cst_98 : f32 to vector<64x32xf32>
    %135 = arith.maximumf %132, %134 : vector<64x32xf32>
    %cst_99 = arith.constant 0.000000e+00 : f32
    %136 = vector.broadcast %cst_99 : f32 to vector<64x32xf32>
    %137 = arith.maximumf %133, %136 : vector<64x32xf32>
    %cst_100 = arith.constant 0.000000e+00 : f32
    %138 = vector.broadcast %cst_100 : f32 to vector<64x32xf32>
    %c2_101 = arith.constant 2 : index
    %c0_102 = arith.constant 0 : index
    %c0_103 = arith.constant 0 : index
    %c0_104 = arith.constant 0 : index
    %139 = vector.load %arg7[%c2_101, %c0_102, %c0_103, %c0_104] : memref<3x3x32x32xf32, #tpu.memory_space<vmem>>, vector<1x1x32x32xf32>
    %140 = vector.shape_cast %139 : vector<1x1x32x32xf32> to vector<32x32xf32>
    %cst_105 = arith.constant dense<0.000000e+00> : vector<64x32xf32>
    %141 = tpu.matmul %135, %140, %cst_105 {dimension_numbers = #tpu.dot_dimension_numbers<[1], [0], [0], [1], [0, 0, 1, 1], [], []>} : vector<64x32xf32>, vector<32x32xf32>, vector<64x32xf32> -> vector<64x32xf32>
    %c2_106 = arith.constant 2 : index
    %c0_107 = arith.constant 0 : index
    %c0_108 = arith.constant 0 : index
    %c0_109 = arith.constant 0 : index
    %142 = vector.load %arg8[%c2_106, %c0_107, %c0_108, %c0_109] : memref<3x3x1x32xf32, #tpu.memory_space<vmem>>, vector<1x1x1x32xf32>
    %143 = vector.shape_cast %142 : vector<1x1x1x32xf32> to vector<1x32xf32>
    %144 = vector.broadcast %143 : vector<1x32xf32> to vector<64x32xf32>
    %145 = arith.addf %141, %144 : vector<64x32xf32>
    %cst_110 = arith.constant 0.000000e+00 : f32
    %146 = vector.broadcast %cst_110 : f32 to vector<64x32xf32>
    %147 = arith.maximumf %145, %146 : vector<64x32xf32>
    %148 = arith.addf %138, %147 : vector<64x32xf32>
    %c2_111 = arith.constant 2 : index
    %c1_112 = arith.constant 1 : index
    %c0_113 = arith.constant 0 : index
    %c0_114 = arith.constant 0 : index
    %149 = vector.load %arg7[%c2_111, %c1_112, %c0_113, %c0_114] : memref<3x3x32x32xf32, #tpu.memory_space<vmem>>, vector<1x1x32x32xf32>
    %150 = vector.shape_cast %149 : vector<1x1x32x32xf32> to vector<32x32xf32>
    %cst_115 = arith.constant dense<0.000000e+00> : vector<64x32xf32>
    %151 = tpu.matmul %135, %150, %cst_115 {dimension_numbers = #tpu.dot_dimension_numbers<[1], [0], [0], [1], [0, 0, 1, 1], [], []>} : vector<64x32xf32>, vector<32x32xf32>, vector<64x32xf32> -> vector<64x32xf32>
    %c2_116 = arith.constant 2 : index
    %c1_117 = arith.constant 1 : index
    %c0_118 = arith.constant 0 : index
    %c0_119 = arith.constant 0 : index
    %152 = vector.load %arg8[%c2_116, %c1_117, %c0_118, %c0_119] : memref<3x3x1x32xf32, #tpu.memory_space<vmem>>, vector<1x1x1x32xf32>
    %153 = vector.shape_cast %152 : vector<1x1x1x32xf32> to vector<1x32xf32>
    %154 = vector.broadcast %153 : vector<1x32xf32> to vector<64x32xf32>
    %155 = arith.addf %151, %154 : vector<64x32xf32>
    %cst_120 = arith.constant 0.000000e+00 : f32
    %156 = vector.broadcast %cst_120 : f32 to vector<64x32xf32>
    %157 = arith.maximumf %155, %156 : vector<64x32xf32>
    %158 = arith.addf %148, %157 : vector<64x32xf32>
    %c2_121 = arith.constant 2 : index
    %c2_122 = arith.constant 2 : index
    %c0_123 = arith.constant 0 : index
    %c0_124 = arith.constant 0 : index
    %159 = vector.load %arg7[%c2_121, %c2_122, %c0_123, %c0_124] : memref<3x3x32x32xf32, #tpu.memory_space<vmem>>, vector<1x1x32x32xf32>
    %160 = vector.shape_cast %159 : vector<1x1x32x32xf32> to vector<32x32xf32>
    %cst_125 = arith.constant dense<0.000000e+00> : vector<64x32xf32>
    %161 = tpu.matmul %137, %160, %cst_125 {dimension_numbers = #tpu.dot_dimension_numbers<[1], [0], [0], [1], [0, 0, 1, 1], [], []>} : vector<64x32xf32>, vector<32x32xf32>, vector<64x32xf32> -> vector<64x32xf32>
    %c2_126 = arith.constant 2 : index
    %c2_127 = arith.constant 2 : index
    %c0_128 = arith.constant 0 : index
    %c0_129 = arith.constant 0 : index
    %162 = vector.load %arg8[%c2_126, %c2_127, %c0_128, %c0_129] : memref<3x3x1x32xf32, #tpu.memory_space<vmem>>, vector<1x1x1x32xf32>
    %163 = vector.shape_cast %162 : vector<1x1x1x32xf32> to vector<1x32xf32>
    %164 = vector.broadcast %163 : vector<1x32xf32> to vector<64x32xf32>
    %165 = arith.addf %161, %164 : vector<64x32xf32>
    %cst_130 = arith.constant 0.000000e+00 : f32
    %166 = vector.broadcast %cst_130 : f32 to vector<64x32xf32>
    %167 = arith.maximumf %165, %166 : vector<64x32xf32>
    %168 = arith.addf %158, %167 : vector<64x32xf32>
    %c0_131 = arith.constant 0 : index
    %c0_132 = arith.constant 0 : index
    %169 = vector.load %arg9[%c0_131, %c0_132] : memref<32x32xf32, #tpu.memory_space<vmem>>, vector<32x32xf32>
    %cst_133 = arith.constant dense<0.000000e+00> : vector<64x32xf32>
    %170 = tpu.matmul %168, %169, %cst_133 {dimension_numbers = #tpu.dot_dimension_numbers<[1], [0], [0], [1], [0, 0, 1, 1], [], []>} : vector<64x32xf32>, vector<32x32xf32>, vector<64x32xf32> -> vector<64x32xf32>
    %c0_134 = arith.constant 0 : index
    %c0_135 = arith.constant 0 : index
    %171 = vector.load %arg10[%c0_134, %c0_135] : memref<1x32xf32, #tpu.memory_space<vmem>>, vector<1x32xf32>
    %172 = vector.broadcast %171 : vector<1x32xf32> to vector<64x32xf32>
    %173 = arith.addf %170, %172 : vector<64x32xf32>
    %cst_136 = arith.constant 0.000000e+00 : f32
    %174 = vector.broadcast %cst_136 : f32 to vector<64x32xf32>
    %175 = arith.maximumf %173, %174 : vector<64x32xf32>
    %c0_137 = arith.constant 0 : index
    %c0_138 = arith.constant 0 : index
    %176 = vector.load %arg11[%c0_137, %c0_138] : memref<32x8xf32, #tpu.memory_space<vmem>>, vector<32x8xf32>
    %cst_139 = arith.constant dense<0.000000e+00> : vector<64x8xf32>
    %177 = tpu.matmul %175, %176, %cst_139 {dimension_numbers = #tpu.dot_dimension_numbers<[1], [0], [0], [1], [0, 0, 1, 1], [], []>} : vector<64x32xf32>, vector<32x8xf32>, vector<64x8xf32> -> vector<64x8xf32>
    %c0_140 = arith.constant 0 : index
    %c0_141 = arith.constant 0 : index
    %178 = vector.load %arg12[%c0_140, %c0_141] : memref<1x8xf32, #tpu.memory_space<vmem>>, vector<1x8xf32>
    %179 = vector.broadcast %178 : vector<1x8xf32> to vector<64x8xf32>
    %180 = arith.addf %177, %179 : vector<64x8xf32>
    %c0_142 = arith.constant 0 : index
    %c0_143 = arith.constant 0 : index
    %181 = vector.load %arg13[%c0_142, %c0_143] : memref<64x8xf32, #tpu.memory_space<vmem>>, vector<64x8xf32>
    tpu.vector_store %arg13[%c0_142, %c0_143], %180 {strides = array<i32>} : memref<64x8xf32, #tpu.memory_space<vmem>>, vector<64x8xf32>,
    return
  }
}

</mosaic_0001>

<llo_original>
// kernel: tpu_custom_call.1
$region0: #{tpu_custom_call.1}
  #allocation0 [shape = 'u32[]', space=smem, size = 0x4, offset = 0x4, fixed_abs, tag = 'smem constant byte address 0x4 - core index']
  #allocation1 [shape = 'u32[72,128]{1,0:T(1,128)}', space=vmem, size = 0x9000, scoped, tag = 'internal scratch']
  %s0 = inlined_call_operand.hbm [shape: f32[6], index: 0, kind: input, shape index: {}]
  %s1 = inlined_call_operand.vmem [shape: f32[64,16], index: 1, kind: input, shape index: {}]
  %s2 = inlined_call_operand.vmem [shape: f32[64,64], index: 2, kind: input, shape index: {}]
  %s3 = inlined_call_operand.hbm [shape: f32[16,32], index: 3, kind: input, shape index: {}]
  %s4 = inlined_call_operand.vmem [shape: f32[1,32], index: 4, kind: input, shape index: {}]
  %s5 = inlined_call_operand.hbm [shape: f32[2,32,32], index: 5, kind: input, shape index: {}]
  %s6 = inlined_call_operand.hbm [shape: f32[2,1,32], index: 6, kind: input, shape index: {}]
  %s7 = inlined_call_operand.hbm [shape: f32[3,3,32,32], index: 7, kind: input, shape index: {}]
  %s8 = inlined_call_operand.vmem [shape: f32[3,3,1,32], index: 8, kind: input, shape index: {}]
  %s9 = inlined_call_operand.vmem [shape: f32[32,32], index: 9, kind: input, shape index: {}]
  %s10 = inlined_call_operand.hbm [shape: f32[1,32], index: 10, kind: input, shape index: {}]
  %s11 = inlined_call_operand.vmem [shape: f32[32,8], index: 11, kind: input, shape index: {}]
  %s12 = inlined_call_operand.vmem [shape: f32[1,8], index: 12, kind: input, shape index: {}]
  %s13 = inlined_call_operand.vmem [shape: f32[64,8], index: 13, kind: output, shape index: {}]
  %s14 = sld [smem:[#allocation0]]
  $region86: #{tpu_custom_call.1} parent=0
    _
  %s16 = ssub.s32 1, %s14
  %s17 = scalar_select 0, %s16, %s14
  $region1: #{tpu_custom_call.1} parent=0
    #allocation2 [shape = 'u8[512]{0}', space=smem, size = 0x200, scoped, tag = 'input window, operand 0, single buffered']
    #allocation3 [shape = 's32[1]{0}', space=sflag, size = 0x4, scoped, tag = 'scoped memory for tpu_custom_call.1']
    #allocation4 [shape = 's32[1]{0}', space=sflag, size = 0x4, scoped, tag = 'scoped memory for tpu_custom_call.1']
    #allocation5 [shape = 'u8[8192]{0}', space=vmem, size = 0x2000, scoped, tag = 'input window, operand 3, single buffered']
    #allocation6 [shape = 'u8[32768]{0}', space=vmem, size = 0x8000, scoped, tag = 'input window, operand 5, single buffered']
    #allocation7 [shape = 's32[1]{0}', space=sflag, size = 0x4, scoped, tag = 'scoped memory for tpu_custom_call.1']
    #allocation8 [shape = 'u8[1024]{0}', space=vmem, size = 0x400, scoped, tag = 'input window, operand 6, single buffered']
    #allocation9 [shape = 'u8[147456]{0}', space=vmem, size = 0x24000, scoped, tag = 'input window, operand 7, single buffered']
    #allocation10 [shape = 's32[1]{0}', space=sflag, size = 0x4, scoped, tag = 'scoped memory for tpu_custom_call.1']
    #allocation11 [shape = 'u8[512]{0}', space=vmem, size = 0x400, scoped, tag = 'input window, operand 10, single buffered']
    %18 = vsyncpa [#allocation4], 0
    %19 = vsyncpa [#allocation3], 0
    %20 = vsyncpa [#allocation7], 0
    %21 = vsyncpa [#allocation10], 0
    // Predicated region
    $region2: #{tpu_custom_call.1} parent=1 // pred_check
      _
    $region3: #{tpu_custom_call.1} parent=1 // pred_check_branch
      %23 = sbr.rel (0) target = $region5
    $region4: #{tpu_custom_call.1} parent=1 // pred_region
      %25 = vsyncadd [#allocation4], 0
      %s27 = sshll.u32 %s0, 4
      %s28 = int_to_ptr.hbm [resolvable:$true] %s27
      %30 = dma.hbm_to_smem %s28, 16, [#allocation2], [#allocation4]
    $region5: #{tpu_custom_call.1} parent=1 // pred_fallthru
      _
    // Predicated region
    $region6: #{tpu_custom_call.1} parent=1 // pred_check
      _
    $region7: #{tpu_custom_call.1} parent=1 // pred_check_branch
      %32 = sbr.rel (0) target = $region9
    $region8: #{tpu_custom_call.1} parent=1 // pred_region
      _
    $region9: #{tpu_custom_call.1} parent=1 // pred_fallthru
      _
    // Predicated region
    $region10: #{tpu_custom_call.1} parent=1 // pred_check
      _
    $region11: #{tpu_custom_call.1} parent=1 // pred_check_branch
      %34 = sbr.rel (0) target = $region13
    $region12: #{tpu_custom_call.1} parent=1 // pred_region
      _
    $region13: #{tpu_custom_call.1} parent=1 // pred_fallthru
      _
    // Predicated region
    $region14: #{tpu_custom_call.1} parent=1 // pred_check
      _
    $region15: #{tpu_custom_call.1} parent=1 // pred_check_branch
      %36 = sbr.rel (0) target = $region17
    $region16: #{tpu_custom_call.1} parent=1 // pred_region
      %38 = vsyncadd [#allocation3], 0
      %s39 = sshll.u32 %s3, 4
      %s40 = int_to_ptr.hbm [resolvable:$true] %s39
      %s41 = sshll.u32 [#allocation5], 4
      %s42 = int_to_ptr.vmem [resolvable:$true] %s41
      %47 = dma.hbm_to_vmem [thread:$0]  %s40, 256, %s42, [#allocation3], 128, 128, 8
    $region17: #{tpu_custom_call.1} parent=1 // pred_fallthru
      _
    // Predicated region
    $region18: #{tpu_custom_call.1} parent=1 // pred_check
      _
    $region19: #{tpu_custom_call.1} parent=1 // pred_check_branch
      %49 = sbr.rel (0) target = $region21
    $region20: #{tpu_custom_call.1} parent=1 // pred_region
      _
    $region21: #{tpu_custom_call.1} parent=1 // pred_fallthru
      _
    // Predicated region
    $region22: #{tpu_custom_call.1} parent=1 // pred_check
      _
    $region23: #{tpu_custom_call.1} parent=1 // pred_check_branch
      %51 = sbr.rel (0) target = $region25
    $region24: #{tpu_custom_call.1} parent=1 // pred_region
      %53 = vsyncadd [#allocation7], 0
      %s54 = sshll.u32 %s5, 4
      %s55 = int_to_ptr.hbm [resolvable:$true] %s54
      %s56 = sshll.u32 [#allocation6], 4
      %s57 = int_to_ptr.vmem [resolvable:$true] %s56
      %62 = dma.hbm_to_vmem [thread:$0]  %s55, 1024, %s57, [#allocation7], 128, 128, 8
    $region25: #{tpu_custom_call.1} parent=1 // pred_fallthru
      _
    // Predicated region
    $region26: #{tpu_custom_call.1} parent=1 // pred_check
      _
    $region27: #{tpu_custom_call.1} parent=1 // pred_check_branch
      %64 = sbr.rel (0) target = $region29
    $region28: #{tpu_custom_call.1} parent=1 // pred_region
      %66 = vsyncadd [#allocation7], 0
      %s67 = sshll.u32 %s6, 4
      %s68 = int_to_ptr.hbm [resolvable:$true] %s67
      %s69 = sshll.u32 [#allocation8], 4
      %s70 = int_to_ptr.vmem [resolvable:$true] %s69
      %75 = dma.hbm_to_vmem [thread:$0]  %s68, 32, %s70, [#allocation7], 16, 16, 1
    $region29: #{tpu_custom_call.1} parent=1 // pred_fallthru
      _
    // Predicated region
    $region30: #{tpu_custom_call.1} parent=1 // pred_check
      _
    $region31: #{tpu_custom_call.1} parent=1 // pred_check_branch
      %77 = sbr.rel (0) target = $region33
    $region32: #{tpu_custom_call.1} parent=1 // pred_region
      %79 = vsyncadd [#allocation10], 0
      %s80 = sshll.u32 %s7, 4
      %s81 = int_to_ptr.hbm [resolvable:$true] %s80
      %s82 = sshll.u32 [#allocation9], 4
      %s83 = int_to_ptr.vmem [resolvable:$true] %s82
      %88 = dma.hbm_to_vmem [thread:$0]  %s81, 4608, %s83, [#allocation10], 128, 128, 8
    $region33: #{tpu_custom_call.1} parent=1 // pred_fallthru
      _
    // Predicated region
    $region34: #{tpu_custom_call.1} parent=1 // pred_check
      _
    $region35: #{tpu_custom_call.1} parent=1 // pred_check_branch
      %90 = sbr.rel (0) target = $region37
    $region36: #{tpu_custom_call.1} parent=1 // pred_region
      _
    $region37: #{tpu_custom_call.1} parent=1 // pred_fallthru
      _
    // Predicated region
    $region38: #{tpu_custom_call.1} parent=1 // pred_check
      _
    $region39: #{tpu_custom_call.1} parent=1 // pred_check_branch
      %92 = sbr.rel (0) target = $region41
    $region40: #{tpu_custom_call.1} parent=1 // pred_region
      _
    $region41: #{tpu_custom_call.1} parent=1 // pred_fallthru
      _
    // Predicated region
    $region42: #{tpu_custom_call.1} parent=1 // pred_check
      _
    $region43: #{tpu_custom_call.1} parent=1 // pred_check_branch
      %94 = sbr.rel (0) target = $region45
    $region44: #{tpu_custom_call.1} parent=1 // pred_region
      %96 = vsyncadd [#allocation10], 0
      %s98 = sshll.u32 %s10, 4
      %s99 = int_to_ptr.hbm [resolvable:$true] %s98
      %s100 = sshll.u32 [#allocation11], 4
      %s101 = int_to_ptr.vmem [resolvable:$true] %s100
      %103 = dma.hbm_to_vmem [thread:$0]  %s99, 16, %s101, [#allocation10]
    $region45: #{tpu_custom_call.1} parent=1 // pred_fallthru
      _
    // Predicated region
    $region46: #{tpu_custom_call.1} parent=1 // pred_check
      _
    $region47: #{tpu_custom_call.1} parent=1 // pred_check_branch
      %105 = sbr.rel (0) target = $region49
    $region48: #{tpu_custom_call.1} parent=1 // pred_region
      _
    $region49: #{tpu_custom_call.1} parent=1 // pred_fallthru
      _
    // Predicated region
    $region50: #{tpu_custom_call.1} parent=1 // pred_check
      _
    $region51: #{tpu_custom_call.1} parent=1 // pred_check_branch
      %107 = sbr.rel (0) target = $region53
    $region52: #{tpu_custom_call.1} parent=1 // pred_region
      _
    $region53: #{tpu_custom_call.1} parent=1 // pred_fallthru
      _
    // Predicated region
    $region54: #{tpu_custom_call.1} parent=1 // pred_check
      _
    $region55: #{tpu_custom_call.1} parent=1 // pred_check_branch
      %109 = sbr.rel (0) target = $region57
    $region56: #{tpu_custom_call.1} parent=1 // pred_region
      %111 = dma.done [#allocation4], 16
    $region57: #{tpu_custom_call.1} parent=1 // pred_fallthru
      _
    // Predicated region
    $region58: #{tpu_custom_call.1} parent=1 // pred_check
      _
    $region59: #{tpu_custom_call.1} parent=1 // pred_check_branch
      %113 = sbr.rel (0) target = $region61
    $region60: #{tpu_custom_call.1} parent=1 // pred_region
      %115 = dma.done [#allocation3], 256
    $region61: #{tpu_custom_call.1} parent=1 // pred_fallthru
      _
    // Predicated region
    $region62: #{tpu_custom_call.1} parent=1 // pred_check
      _
    $region63: #{tpu_custom_call.1} parent=1 // pred_check_branch
      %117 = sbr.rel (0) target = $region65
    $region64: #{tpu_custom_call.1} parent=1 // pred_region
      %119 = dma.done [#allocation7], 1024
    $region65: #{tpu_custom_call.1} parent=1 // pred_fallthru
      _
    // Predicated region
    $region66: #{tpu_custom_call.1} parent=1 // pred_check
      _
    $region67: #{tpu_custom_call.1} parent=1 // pred_check_branch
      %121 = sbr.rel (0) target = $region69
    $region68: #{tpu_custom_call.1} parent=1 // pred_region
      %123 = dma.done [#allocation7], 32
    $region69: #{tpu_custom_call.1} parent=1 // pred_fallthru
      _
    // Predicated region
    $region70: #{tpu_custom_call.1} parent=1 // pred_check
      _
    $region71: #{tpu_custom_call.1} parent=1 // pred_check_branch
      %125 = sbr.rel (0) target = $region73
    $region72: #{tpu_custom_call.1} parent=1 // pred_region
      %127 = dma.done [#allocation10], 4608
    $region73: #{tpu_custom_call.1} parent=1 // pred_fallthru
      _
    // Predicated region
    $region74: #{tpu_custom_call.1} parent=1 // pred_check
      _
    $region75: #{tpu_custom_call.1} parent=1 // pred_check_branch
      %129 = sbr.rel (0) target = $region77
    $region76: #{tpu_custom_call.1} parent=1 // pred_region
      %131 = dma.done [#allocation10], 16
    $region77: #{tpu_custom_call.1} parent=1 // pred_fallthru
      _
    %132 = sfence
    %v133 = vld [vmem:[%s1] sm:$0xff]
    %v134 = vld [vmem:[%s1 + $0x8] sm:$0xff]
    %v135 = vld [vmem:[%s1 + $0x10] sm:$0xff]
    %v136 = vld [vmem:[%s1 + $0x18] sm:$0xff]
    %v137 = vld [vmem:[%s1 + $0x20] sm:$0xff]
    %v138 = vld [vmem:[%s1 + $0x28] sm:$0xff]
    %v139 = vld [vmem:[%s1 + $0x30] sm:$0xff]
    %v140 = vld [vmem:[%s1 + $0x38] sm:$0xff]
    %v141 = vld [vmem:[#allocation5] sm:$0xff]
    %v142 = vld [vmem:[#allocation5 + $0x8] sm:$0xff]
    %v143 = vld [vmem:[%s4] sm:$0x1]
    %v145 = vperm.slane %v143, 0
    %vm147 = vcmask 130048
    %v149 = vsel %vm147, %v133, 0
    %v152 = vsel %vm147, %v134, 0
    %v155 = vsel %vm147, %v135, 0
    %v158 = vsel %vm147, %v136, 0
    %v161 = vsel %vm147, %v137, 0
    %v164 = vsel %vm147, %v138, 0
    %v167 = vsel %vm147, %v139, 0
    %v170 = vsel %vm147, %v140, 0
    %172 = vmatpush.msra.mxu0 0.0
    %173 = vmatpush.msra.mxu0 0.0
    %174 = vmatpush.msra.mxu0 0.0
    %175 = vmatpush.msra.mxu0 0.0
    %176 = vmatpush.msra.mxu0 0.0
    %177 = vmatpush.msra.mxu0 0.0
    %178 = vmatpush.msra.mxu0 0.0
    %179 = vmatpush.msra.mxu0 0.0
    %180 = vmatpush.msra.mxu0 0.0
    %181 = vmatpush.msra.mxu0 0.0
    %182 = vmatpush.msra.mxu0 0.0
    %183 = vmatpush.msra.mxu0 0.0
    %184 = vmatpush.msra.mxu0 0.0
    %185 = vmatpush.msra.mxu0 0.0
    %186 = vmatpush.msra.mxu0 %v142
    %187 = vmatpush.msra.mxu0 %v141
    %188 = vmatmul.f32.gmra.mxu0 %v149
    %v189 = vpop.f32.mrf.mxu0
    %v190 = vadd.f32 %v145, %v189
    %191 = vmatmul.f32.gmra.mxu0 %v152
    %v192 = vpop.f32.mrf.mxu0
    %v193 = vadd.f32 %v145, %v192
    %194 = vmatmul.f32.gmra.mxu0 %v155
    %v195 = vpop.f32.mrf.mxu0
    %v196 = vadd.f32 %v145, %v195
    %197 = vmatmul.f32.gmra.mxu0 %v158
    %v198 = vpop.f32.mrf.mxu0
    %v199 = vadd.f32 %v145, %v198
    %200 = vmatmul.f32.gmra.mxu0 %v161
    %v201 = vpop.f32.mrf.mxu0
    %v202 = vadd.f32 %v145, %v201
    %203 = vmatmul.f32.gmra.mxu0 %v164
    %v204 = vpop.f32.mrf.mxu0
    %v205 = vadd.f32 %v145, %v204
    %206 = vmatmul.f32.gmra.mxu0 %v167
    %v207 = vpop.f32.mrf.mxu0
    %v208 = vadd.f32 %v145, %v207
    %209 = vmatmul.f32.gmra.mxu0 %v170
    %v210 = vpop.f32.mrf.mxu0
    %v211 = vadd.f32 %v145, %v210
    %212 = vdwg.mxu0
    %s213 = sld [smem:[#allocation2]]
    %v214 = vstv %s213
    %v215 = vmul.f32 %v190, %v214
    %v216 = vmul.f32 %v193, %v214
    %v217 = vmul.f32 %v196, %v214
    %v218 = vmul.f32 %v199, %v214
    %v219 = vmul.f32 %v202, %v214
    %v220 = vmul.f32 %v205, %v214
    %v221 = vmul.f32 %v208, %v214
    %v222 = vmul.f32 %v211, %v214
    %v223 = vmax.f32 %v215, 0.0
    %v224 = vmax.f32 %v216, 0.0
    %v225 = vmax.f32 %v217, 0.0
    %v226 = vmax.f32 %v218, 0.0
    %v227 = vmax.f32 %v219, 0.0
    %v228 = vmax.f32 %v220, 0.0
    %v229 = vmax.f32 %v221, 0.0
    %v230 = vmax.f32 %v222, 0.0
    %v231 = vld [vmem:[#allocation9] sm:$0xff]
    %v232 = vld [vmem:[#allocation9 + $0x8] sm:$0xff]
    %v233 = vld [vmem:[#allocation9 + $0x10] sm:$0xff]
    %v234 = vld [vmem:[#allocation9 + $0x18] sm:$0xff]
    %v235 = vld [vmem:[%s8] sm:$0x1]
    %v237 = vperm.slane %v235, 0
    %vm239 = vcmask 261120
    %v241 = vsel %vm239, %v223, 0
    %v244 = vsel %vm239, %v224, 0
    %v247 = vsel %vm239, %v225, 0
    %v250 = vsel %vm239, %v226, 0
    %v253 = vsel %vm239, %v227, 0
    %v256 = vsel %vm239, %v228, 0
    %v259 = vsel %vm239, %v229, 0
    %v262 = vsel %vm239, %v230, 0
    %264 = vmatpush.msra.mxu0 0.0
    %265 = vmatpush.msra.mxu0 0.0
    %266 = vmatpush.msra.mxu0 0.0
    %267 = vmatpush.msra.mxu0 0.0
    %268 = vmatpush.msra.mxu0 0.0
    %269 = vmatpush.msra.mxu0 0.0
    %270 = vmatpush.msra.mxu0 0.0
    %271 = vmatpush.msra.mxu0 0.0
    %272 = vmatpush.msra.mxu0 0.0
    %273 = vmatpush.msra.mxu0 0.0
    %274 = vmatpush.msra.mxu0 0.0
    %275 = vmatpush.msra.mxu0 0.0
    %276 = vmatpush.msra.mxu0 %v234
    %277 = vmatpush.msra.mxu0 %v233
    %278 = vmatpush.msra.mxu0 %v232
    %279 = vmatpush.msra.mxu0 %v231
    %280 = vmatmul.f32.gmra.mxu0 %v241
    %v281 = vpop.f32.mrf.mxu0
    %v282 = vadd.f32 %v237, %v281
    %283 = vmatmul.f32.gmra.mxu0 %v244
    %v284 = vpop.f32.mrf.mxu0
    %v285 = vadd.f32 %v237, %v284
    %286 = vmatmul.f32.gmra.mxu0 %v247
    %v287 = vpop.f32.mrf.mxu0
    %v288 = vadd.f32 %v237, %v287
    %289 = vmatmul.f32.gmra.mxu0 %v250
    %v290 = vpop.f32.mrf.mxu0
    %v291 = vadd.f32 %v237, %v290
    %292 = vmatmul.f32.gmra.mxu0 %v253
    %v293 = vpop.f32.mrf.mxu0
    %v294 = vadd.f32 %v237, %v293
    %295 = vmatmul.f32.gmra.mxu0 %v256
    %v296 = vpop.f32.mrf.mxu0
    %v297 = vadd.f32 %v237, %v296
    %298 = vmatmul.f32.gmra.mxu0 %v259
    %v299 = vpop.f32.mrf.mxu0
    %v300 = vadd.f32 %v237, %v299
    %301 = vmatmul.f32.gmra.mxu0 %v262
    %v302 = vpop.f32.mrf.mxu0
    %v303 = vadd.f32 %v237, %v302
    %304 = vdwg.mxu0
    %v305 = vmax.f32 %v282, 0.0
    %v306 = vmax.f32 %v285, 0.0
    %v307 = vmax.f32 %v288, 0.0
    %v308 = vmax.f32 %v291, 0.0
    %v309 = vmax.f32 %v294, 0.0
    %v310 = vmax.f32 %v297, 0.0
    %v311 = vmax.f32 %v300, 0.0
    %v312 = vmax.f32 %v303, 0.0
    %v313 = vadd.f32 %v305, 0.0
    %v314 = vadd.f32 %v306, 0.0
    %v315 = vadd.f32 %v307, 0.0
    %v316 = vadd.f32 %v308, 0.0
    %v317 = vadd.f32 %v309, 0.0
    %v318 = vadd.f32 %v310, 0.0
    %v319 = vadd.f32 %v311, 0.0
    %v320 = vadd.f32 %v312, 0.0
    %s321 = scalar_lea.vmem [#allocation9], 32
    %v322 = vld [vmem:[%s321] sm:$0xff]
    %v323 = vld [vmem:[%s321 + $0x8] sm:$0xff]
    %v324 = vld [vmem:[%s321 + $0x10] sm:$0xff]
    %v325 = vld [vmem:[%s321 + $0x18] sm:$0xff]
    %s326 = scalar_lea.vmem %s8, 1
    %v327 = vld [vmem:[%s326] sm:$0x1]
    %v329 = vperm.slane %v327, 0
    %331 = vmatpush.msra.mxu0 0.0
    %332 = vmatpush.msra.mxu0 0.0
    %333 = vmatpush.msra.mxu0 0.0
    %334 = vmatpush.msra.mxu0 0.0
    %335 = vmatpush.msra.mxu0 0.0
    %336 = vmatpush.msra.mxu0 0.0
    %337 = vmatpush.msra.mxu0 0.0
    %338 = vmatpush.msra.mxu0 0.0
    %339 = vmatpush.msra.mxu0 0.0
    %340 = vmatpush.msra.mxu0 0.0
    %341 = vmatpush.msra.mxu0 0.0
    %342 = vmatpush.msra.mxu0 0.0
    %343 = vmatpush.msra.mxu0 %v325
    %344 = vmatpush.msra.mxu0 %v324
    %345 = vmatpush.msra.mxu0 %v323
    %346 = vmatpush.msra.mxu0 %v322
    %347 = vmatmul.f32.gmra.mxu0 %v241
    %v348 = vpop.f32.mrf.mxu0
    %v349 = vadd.f32 %v329, %v348
    %350 = vmatmul.f32.gmra.mxu0 %v244
    %v351 = vpop.f32.mrf.mxu0
    %v352 = vadd.f32 %v329, %v351
    %353 = vmatmul.f32.gmra.mxu0 %v247
    %v354 = vpop.f32.mrf.mxu0
    %v355 = vadd.f32 %v329, %v354
    %356 = vmatmul.f32.gmra.mxu0 %v250
    %v357 = vpop.f32.mrf.mxu0
    %v358 = vadd.f32 %v329, %v357
    %359 = vmatmul.f32.gmra.mxu0 %v253
    %v360 = vpop.f32.mrf.mxu0
    %v361 = vadd.f32 %v329, %v360
    %362 = vmatmul.f32.gmra.mxu0 %v256
    %v363 = vpop.f32.mrf.mxu0
    %v364 = vadd.f32 %v329, %v363
    %365 = vmatmul.f32.gmra.mxu0 %v259
    %v366 = vpop.f32.mrf.mxu0
    %v367 = vadd.f32 %v329, %v366
    %368 = vmatmul.f32.gmra.mxu0 %v262
    %v369 = vpop.f32.mrf.mxu0
    %v370 = vadd.f32 %v329, %v369
    %371 = vdwg.mxu0
    %v372 = vmax.f32 %v349, 0.0
    %v373 = vmax.f32 %v352, 0.0
    %v374 = vmax.f32 %v355, 0.0
    %v375 = vmax.f32 %v358, 0.0
    %v376 = vmax.f32 %v361, 0.0
    %v377 = vmax.f32 %v364, 0.0
    %v378 = vmax.f32 %v367, 0.0
    %v379 = vmax.f32 %v370, 0.0
    %v380 = vadd.f32 %v313, %v372
    %v381 = vadd.f32 %v314, %v373
    %v382 = vadd.f32 %v315, %v374
    %v383 = vadd.f32 %v316, %v375
    %v384 = vadd.f32 %v317, %v376
    %v385 = vadd.f32 %v318, %v377
    %v386 = vadd.f32 %v319, %v378
    %v387 = vadd.f32 %v320, %v379
    %s388 = scalar_lea.vmem [#allocation9], 64
    %v389 = vld [vmem:[%s388] sm:$0xff]
    %v390 = vld [vmem:[%s388 + $0x8] sm:$0xff]
    %v391 = vld [vmem:[%s388 + $0x10] sm:$0xff]
    %v392 = vld [vmem:[%s388 + $0x18] sm:$0xff]
    %s393 = scalar_lea.vmem %s8, 2
    %v394 = vld [vmem:[%s393] sm:$0x1]
    %v396 = vperm.slane %v394, 0
    %398 = vmatpush.msra.mxu0 0.0
    %399 = vmatpush.msra.mxu0 0.0
    %400 = vmatpush.msra.mxu0 0.0
    %401 = vmatpush.msra.mxu0 0.0
    %402 = vmatpush.msra.mxu0 0.0
    %403 = vmatpush.msra.mxu0 0.0
    %404 = vmatpush.msra.mxu0 0.0
    %405 = vmatpush.msra.mxu0 0.0
    %406 = vmatpush.msra.mxu0 0.0
    %407 = vmatpush.msra.mxu0 0.0
    %408 = vmatpush.msra.mxu0 0.0
    %409 = vmatpush.msra.mxu0 0.0
    %410 = vmatpush.msra.mxu0 %v392
    %411 = vmatpush.msra.mxu0 %v391
    %412 = vmatpush.msra.mxu0 %v390
    %413 = vmatpush.msra.mxu0 %v389
    %414 = vmatmul.f32.gmra.mxu0 %v241
    %v415 = vpop.f32.mrf.mxu0
    %v416 = vadd.f32 %v396, %v415
    %417 = vmatmul.f32.gmra.mxu0 %v244
    %v418 = vpop.f32.mrf.mxu0
    %v419 = vadd.f32 %v396, %v418
    %420 = vmatmul.f32.gmra.mxu0 %v247
    %v421 = vpop.f32.mrf.mxu0
    %v422 = vadd.f32 %v396, %v421
    %423 = vmatmul.f32.gmra.mxu0 %v250
    %v424 = vpop.f32.mrf.mxu0
    %v425 = vadd.f32 %v396, %v424
    %426 = vmatmul.f32.gmra.mxu0 %v253
    %v427 = vpop.f32.mrf.mxu0
    %v428 = vadd.f32 %v396, %v427
    %429 = vmatmul.f32.gmra.mxu0 %v256
    %v430 = vpop.f32.mrf.mxu0
    %v431 = vadd.f32 %v396, %v430
    %432 = vmatmul.f32.gmra.mxu0 %v259
    %v433 = vpop.f32.mrf.mxu0
    %v434 = vadd.f32 %v396, %v433
    %435 = vmatmul.f32.gmra.mxu0 %v262
    %v436 = vpop.f32.mrf.mxu0
    %v437 = vadd.f32 %v396, %v436
    %438 = vdwg.mxu0
    %v439 = vmax.f32 %v416, 0.0
    %v440 = vmax.f32 %v419, 0.0
    %v441 = vmax.f32 %v422, 0.0
    %v442 = vmax.f32 %v425, 0.0
    %v443 = vmax.f32 %v428, 0.0
    %v444 = vmax.f32 %v431, 0.0
    %v445 = vmax.f32 %v434, 0.0
    %v446 = vmax.f32 %v437, 0.0
    %v447 = vadd.f32 %v380, %v439
    %v448 = vadd.f32 %v381, %v440
    %v449 = vadd.f32 %v382, %v441
    %v450 = vadd.f32 %v383, %v442
    %v451 = vadd.f32 %v384, %v443
    %v452 = vadd.f32 %v385, %v444
    %v453 = vadd.f32 %v386, %v445
    %v454 = vadd.f32 %v387, %v446
    %v455 = vld [vmem:[#allocation6] sm:$0xff]
    %v456 = vld [vmem:[#allocation6 + $0x8] sm:$0xff]
    %v457 = vld [vmem:[#allocation6 + $0x10] sm:$0xff]
    %v458 = vld [vmem:[#allocation6 + $0x18] sm:$0xff]
    %v460 = vsel %vm239, %v447, 0
    %v463 = vsel %vm239, %v448, 0
    %v466 = vsel %vm239, %v449, 0
    %v469 = vsel %vm239, %v450, 0
    %v472 = vsel %vm239, %v451, 0
    %v475 = vsel %vm239, %v452, 0
    %v478 = vsel %vm239, %v453, 0
    %v481 = vsel %vm239, %v454, 0
    %483 = vmatpush.msra.mxu0 0.0
    %484 = vmatpush.msra.mxu0 0.0
    %485 = vmatpush.msra.mxu0 0.0
    %486 = vmatpush.msra.mxu0 0.0
    %487 = vmatpush.msra.mxu0 0.0
    %488 = vmatpush.msra.mxu0 0.0
    %489 = vmatpush.msra.mxu0 0.0
    %490 = vmatpush.msra.mxu0 0.0
    %491 = vmatpush.msra.mxu0 0.0
    %492 = vmatpush.msra.mxu0 0.0
    %493 = vmatpush.msra.mxu0 0.0
    %494 = vmatpush.msra.mxu0 0.0
    %495 = vmatpush.msra.mxu0 %v458
    %496 = vmatpush.msra.mxu0 %v457
    %497 = vmatpush.msra.mxu0 %v456
    %498 = vmatpush.msra.mxu0 %v455
    %499 = vmatmul.f32.gmra.mxu0 %v460
    %v500 = vpop.f32.mrf.mxu0
    %v501 = vadd.f32 0.0, %v500
    %502 = vmatmul.f32.gmra.mxu0 %v463
    %v503 = vpop.f32.mrf.mxu0
    %v504 = vadd.f32 0.0, %v503
    %505 = vmatmul.f32.gmra.mxu0 %v466
    %v506 = vpop.f32.mrf.mxu0
    %v507 = vadd.f32 0.0, %v506
    %508 = vmatmul.f32.gmra.mxu0 %v469
    %v509 = vpop.f32.mrf.mxu0
    %v510 = vadd.f32 0.0, %v509
    %511 = vmatmul.f32.gmra.mxu0 %v472
    %v512 = vpop.f32.mrf.mxu0
    %v513 = vadd.f32 0.0, %v512
    %514 = vmatmul.f32.gmra.mxu0 %v475
    %v515 = vpop.f32.mrf.mxu0
    %v516 = vadd.f32 0.0, %v515
    %517 = vmatmul.f32.gmra.mxu0 %v478
    %v518 = vpop.f32.mrf.mxu0
    %v519 = vadd.f32 0.0, %v518
    %520 = vmatmul.f32.gmra.mxu0 %v481
    %v521 = vpop.f32.mrf.mxu0
    %v522 = vadd.f32 0.0, %v521
    %523 = vdwg.mxu0
    %v524 = vld [vmem:[%s2] sm:$0xff]
    %v525 = vld [vmem:[%s2 + $0x8] sm:$0xff]
    %v526 = vld [vmem:[%s2 + $0x10] sm:$0xff]
    %v527 = vld [vmem:[%s2 + $0x18] sm:$0xff]
    %v528 = vld [vmem:[%s2 + $0x20] sm:$0xff]
    %v529 = vld [vmem:[%s2 + $0x28] sm:$0xff]
    %v530 = vld [vmem:[%s2 + $0x30] sm:$0xff]
    %v531 = vld [vmem:[%s2 + $0x38] sm:$0xff]
    %v532 = vld [vmem:[#allocation8] sm:$0x1]
    %v534 = vperm.slane %v532, 0
    %vm536 = vcmask 523264
    %v538 = vsel %vm536, %v524, 0
    %v541 = vsel %vm536, %v525, 0
    %v544 = vsel %vm536, %v526, 0
    %v547 = vsel %vm536, %v527, 0
    %v550 = vsel %vm536, %v528, 0
    %v553 = vsel %vm536, %v529, 0
    %v556 = vsel %vm536, %v530, 0
    %v559 = vsel %vm536, %v531, 0
    %561 = vmatpush.msra.mxu0 0.0
    %562 = vmatpush.msra.mxu0 0.0
    %563 = vmatpush.msra.mxu0 0.0
    %564 = vmatpush.msra.mxu0 0.0
    %565 = vmatpush.msra.mxu0 0.0
    %566 = vmatpush.msra.mxu0 0.0
    %567 = vmatpush.msra.mxu0 0.0
    %568 = vmatpush.msra.mxu0 0.0
    %569 = vmatpush.msra.mxu0 %v522
    %570 = vmatpush.msra.mxu0 %v519
    %571 = vmatpush.msra.mxu0 %v516
    %572 = vmatpush.msra.mxu0 %v513
    %573 = vmatpush.msra.mxu0 %v510
    %574 = vmatpush.msra.mxu0 %v507
    %575 = vmatpush.msra.mxu0 %v504
    %576 = vmatpush.msra.mxu0 %v501
    %577 = vmatmul.f32.gmra.mxu0 %v538
    %v578 = vpop.f32.mrf.mxu0
    %v579 = vadd.f32 %v534, %v578
    %580 = vmatmul.f32.gmra.mxu0 %v541
    %v581 = vpop.f32.mrf.mxu0
    %v582 = vadd.f32 %v534, %v581
    %583 = vmatmul.f32.gmra.mxu0 %v544
    %v584 = vpop.f32.mrf.mxu0
    %v585 = vadd.f32 %v534, %v584
    %586 = vmatmul.f32.gmra.mxu0 %v547
    %v587 = vpop.f32.mrf.mxu0
    %v588 = vadd.f32 %v534, %v587
    %589 = vmatmul.f32.gmra.mxu0 %v550
    %v590 = vpop.f32.mrf.mxu0
    %v591 = vadd.f32 %v534, %v590
    %592 = vmatmul.f32.gmra.mxu0 %v553
    %v593 = vpop.f32.mrf.mxu0
    %v594 = vadd.f32 %v534, %v593
    %595 = vmatmul.f32.gmra.mxu0 %v556
    %v596 = vpop.f32.mrf.mxu0
    %v597 = vadd.f32 %v534, %v596
    %598 = vmatmul.f32.gmra.mxu0 %v559
    %v599 = vpop.f32.mrf.mxu0
    %v600 = vadd.f32 %v534, %v599
    %601 = vdwg.mxu0
    %vm602 = vcmp.gt.f32.partialorder %v579, 0.0
    %vm603 = vcmp.gt.f32.partialorder %v582, 0.0
    %vm604 = vcmp.gt.f32.partialorder %v585, 0.0
    %vm605 = vcmp.gt.f32.partialorder %v588, 0.0
    %vm606 = vcmp.gt.f32.partialorder %v591, 0.0
    %vm607 = vcmp.gt.f32.partialorder %v594, 0.0
    %vm608 = vcmp.gt.f32.partialorder %v597, 0.0
    %vm609 = vcmp.gt.f32.partialorder %v600, 0.0
    %v610 = vmin.f32 %v579, 0.0
    %v611 = vmin.f32 %v582, 0.0
    %v612 = vmin.f32 %v585, 0.0
    %v613 = vmin.f32 %v588, 0.0
    %v614 = vmin.f32 %v591, 0.0
    %v615 = vmin.f32 %v594, 0.0
    %v616 = vmin.f32 %v597, 0.0
    %v617 = vmin.f32 %v600, 0.0
    %v618 = vmul.f32 %v610, 1.442695
    %v619 = vpow.pop %v618
    %v620 = vmul.f32 %v611, 1.442695
    %v621 = vpow.pop %v620
    %v622 = vmul.f32 %v612, 1.442695
    %v623 = vpow.pop %v622
    %v624 = vmul.f32 %v613, 1.442695
    %v625 = vpow.pop %v624
    %v626 = vmul.f32 %v614, 1.442695
    %v627 = vpow.pop %v626
    %v628 = vmul.f32 %v615, 1.442695
    %v629 = vpow.pop %v628
    %v630 = vmul.f32 %v616, 1.442695
    %v631 = vpow.pop %v630
    %v632 = vmul.f32 %v617, 1.442695
    %v633 = vpow.pop %v632
    %v634 = vsub.f32 %v619, 1.0
    %v635 = vsub.f32 %v621, 1.0
    %v636 = vsub.f32 %v623, 1.0
    %v637 = vsub.f32 %v625, 1.0
    %v638 = vsub.f32 %v627, 1.0
    %v639 = vsub.f32 %v629, 1.0
    %v640 = vsub.f32 %v631, 1.0
    %v641 = vsub.f32 %v633, 1.0
    %v642 = vsel %vm602, %v579, %v634
    %v643 = vsel %vm603, %v582, %v635
    %v644 = vsel %vm604, %v585, %v636
    %v645 = vsel %vm605, %v588, %v637
    %v646 = vsel %vm606, %v591, %v638
    %v647 = vsel %vm607, %v594, %v639
    %v648 = vsel %vm608, %v597, %v640
    %v649 = vsel %vm609, %v600, %v641
    %s650 = sld [smem:[#allocation2 + $0x1]]
    %v651 = vstv %s650
    %v652 = vmul.f32 %v190, %v651
    %v653 = vmul.f32 %v193, %v651
    %v654 = vmul.f32 %v196, %v651
    %v655 = vmul.f32 %v199, %v651
    %v656 = vmul.f32 %v202, %v651
    %v657 = vmul.f32 %v205, %v651
    %v658 = vmul.f32 %v208, %v651
    %v659 = vmul.f32 %v211, %v651
    %s660 = sld [smem:[#allocation2 + $0x2]]
    %v661 = vstv %s660
    %v662 = vmul.f32 %v642, %v661
    %v663 = vmul.f32 %v643, %v661
    %v664 = vmul.f32 %v644, %v661
    %v665 = vmul.f32 %v645, %v661
    %v666 = vmul.f32 %v646, %v661
    %v667 = vmul.f32 %v647, %v661
    %v668 = vmul.f32 %v648, %v661
    %v669 = vmul.f32 %v649, %v661
    %v670 = vadd.f32 %v652, %v662
    %v671 = vadd.f32 %v653, %v663
    %v672 = vadd.f32 %v654, %v664
    %v673 = vadd.f32 %v655, %v665
    %v674 = vadd.f32 %v656, %v666
    %v675 = vadd.f32 %v657, %v667
    %v676 = vadd.f32 %v658, %v668
    %v677 = vadd.f32 %v659, %v669
    %v678 = vmax.f32 %v652, %v662
    %v679 = vmax.f32 %v653, %v663
    %v680 = vmax.f32 %v654, %v664
    %v681 = vmax.f32 %v655, %v665
    %v682 = vmax.f32 %v656, %v666
    %v683 = vmax.f32 %v657, %v667
    %v684 = vmax.f32 %v658, %v668
    %v685 = vmax.f32 %v659, %v669
    %v686 = vmax.f32 %v670, 0.0
    %v687 = vmax.f32 %v671, 0.0
    %v688 = vmax.f32 %v672, 0.0
    %v689 = vmax.f32 %v673, 0.0
    %v690 = vmax.f32 %v674, 0.0
    %v691 = vmax.f32 %v675, 0.0
    %v692 = vmax.f32 %v676, 0.0
    %v693 = vmax.f32 %v677, 0.0
    %v694 = vmax.f32 %v678, 0.0
    %v695 = vmax.f32 %v679, 0.0
    %v696 = vmax.f32 %v680, 0.0
    %v697 = vmax.f32 %v681, 0.0
    %v698 = vmax.f32 %v682, 0.0
    %v699 = vmax.f32 %v683, 0.0
    %v700 = vmax.f32 %v684, 0.0
    %v701 = vmax.f32 %v685, 0.0
    %s702 = scalar_lea.vmem [#allocation9], 96
    %v703 = vld [vmem:[%s702] sm:$0xff]
    %v704 = vld [vmem:[%s702 + $0x8] sm:$0xff]
    %v705 = vld [vmem:[%s702 + $0x10] sm:$0xff]
    %v706 = vld [vmem:[%s702 + $0x18] sm:$0xff]
    %s707 = scalar_lea.vmem %s8, 3
    %v708 = vld [vmem:[%s707] sm:$0x1]
    %v710 = vperm.slane %v708, 0
    %v713 = vsel %vm239, %v686, 0
    %v716 = vsel %vm239, %v687, 0
    %v719 = vsel %vm239, %v688, 0
    %v722 = vsel %vm239, %v689, 0
    %v725 = vsel %vm239, %v690, 0
    %v728 = vsel %vm239, %v691, 0
    %v731 = vsel %vm239, %v692, 0
    %v734 = vsel %vm239, %v693, 0
    %736 = vmatpush.msra.mxu0 0.0
    %737 = vmatpush.msra.mxu0 0.0
    %738 = vmatpush.msra.mxu0 0.0
    %739 = vmatpush.msra.mxu0 0.0
    %740 = vmatpush.msra.mxu0 0.0
    %741 = vmatpush.msra.mxu0 0.0
    %742 = vmatpush.msra.mxu0 0.0
    %743 = vmatpush.msra.mxu0 0.0
    %744 = vmatpush.msra.mxu0 0.0
    %745 = vmatpush.msra.mxu0 0.0
    %746 = vmatpush.msra.mxu0 0.0
    %747 = vmatpush.msra.mxu0 0.0
    %748 = vmatpush.msra.mxu0 %v706
    %749 = vmatpush.msra.mxu0 %v705
    %750 = vmatpush.msra.mxu0 %v704
    %751 = vmatpush.msra.mxu0 %v703
    %752 = vmatmul.f32.gmra.mxu0 %v713
    %v753 = vpop.f32.mrf.mxu0
    %v754 = vadd.f32 %v710, %v753
    %755 = vmatmul.f32.gmra.mxu0 %v716
    %v756 = vpop.f32.mrf.mxu0
    %v757 = vadd.f32 %v710, %v756
    %758 = vmatmul.f32.gmra.mxu0 %v719
    %v759 = vpop.f32.mrf.mxu0
    %v760 = vadd.f32 %v710, %v759
    %761 = vmatmul.f32.gmra.mxu0 %v722
    %v762 = vpop.f32.mrf.mxu0
    %v763 = vadd.f32 %v710, %v762
    %764 = vmatmul.f32.gmra.mxu0 %v725
    %v765 = vpop.f32.mrf.mxu0
    %v766 = vadd.f32 %v710, %v765
    %767 = vmatmul.f32.gmra.mxu0 %v728
    %v768 = vpop.f32.mrf.mxu0
    %v769 = vadd.f32 %v710, %v768
    %770 = vmatmul.f32.gmra.mxu0 %v731
    %v771 = vpop.f32.mrf.mxu0
    %v772 = vadd.f32 %v710, %v771
    %773 = vmatmul.f32.gmra.mxu0 %v734
    %v774 = vpop.f32.mrf.mxu0
    %v775 = vadd.f32 %v710, %v774
    %776 = vdwg.mxu0
    %v777 = vmax.f32 %v754, 0.0
    %v778 = vmax.f32 %v757, 0.0
    %v779 = vmax.f32 %v760, 0.0
    %v780 = vmax.f32 %v763, 0.0
    %v781 = vmax.f32 %v766, 0.0
    %v782 = vmax.f32 %v769, 0.0
    %v783 = vmax.f32 %v772, 0.0
    %v784 = vmax.f32 %v775, 0.0
    %v785 = vadd.f32 %v777, 0.0
    %v786 = vadd.f32 %v778, 0.0
    %v787 = vadd.f32 %v779, 0.0
    %v788 = vadd.f32 %v780, 0.0
    %v789 = vadd.f32 %v781, 0.0
    %v790 = vadd.f32 %v782, 0.0
    %v791 = vadd.f32 %v783, 0.0
    %v792 = vadd.f32 %v784, 0.0
    %s793 = scalar_lea.vmem [#allocation9], 128
    %v794 = vld [vmem:[%s793] sm:$0xff]
    %v795 = vld [vmem:[%s793 + $0x8] sm:$0xff]
    %v796 = vld [vmem:[%s793 + $0x10] sm:$0xff]
    %v797 = vld [vmem:[%s793 + $0x18] sm:$0xff]
    %s798 = scalar_lea.vmem %s8, 4
    %v799 = vld [vmem:[%s798] sm:$0x1]
    %v801 = vperm.slane %v799, 0
    %803 = vmatpush.msra.mxu0 0.0
    %804 = vmatpush.msra.mxu0 0.0
    %805 = vmatpush.msra.mxu0 0.0
    %806 = vmatpush.msra.mxu0 0.0
    %807 = vmatpush.msra.mxu0 0.0
    %808 = vmatpush.msra.mxu0 0.0
    %809 = vmatpush.msra.mxu0 0.0
    %810 = vmatpush.msra.mxu0 0.0
    %811 = vmatpush.msra.mxu0 0.0
    %812 = vmatpush.msra.mxu0 0.0
    %813 = vmatpush.msra.mxu0 0.0
    %814 = vmatpush.msra.mxu0 0.0
    %815 = vmatpush.msra.mxu0 %v797
    %816 = vmatpush.msra.mxu0 %v796
    %817 = vmatpush.msra.mxu0 %v795
    %818 = vmatpush.msra.mxu0 %v794
    %819 = vmatmul.f32.gmra.mxu0 %v713
    %v820 = vpop.f32.mrf.mxu0
    %v821 = vadd.f32 %v801, %v820
    %822 = vmatmul.f32.gmra.mxu0 %v716
    %v823 = vpop.f32.mrf.mxu0
    %v824 = vadd.f32 %v801, %v823
    %825 = vmatmul.f32.gmra.mxu0 %v719
    %v826 = vpop.f32.mrf.mxu0
    %v827 = vadd.f32 %v801, %v826
    %828 = vmatmul.f32.gmra.mxu0 %v722
    %v829 = vpop.f32.mrf.mxu0
    %v830 = vadd.f32 %v801, %v829
    %831 = vmatmul.f32.gmra.mxu0 %v725
    %v832 = vpop.f32.mrf.mxu0
    %v833 = vadd.f32 %v801, %v832
    %834 = vmatmul.f32.gmra.mxu0 %v728
    %v835 = vpop.f32.mrf.mxu0
    %v836 = vadd.f32 %v801, %v835
    %837 = vmatmul.f32.gmra.mxu0 %v731
    %v838 = vpop.f32.mrf.mxu0
    %v839 = vadd.f32 %v801, %v838
    %840 = vmatmul.f32.gmra.mxu0 %v734
    %v841 = vpop.f32.mrf.mxu0
    %v842 = vadd.f32 %v801, %v841
    %843 = vdwg.mxu0
    %v844 = vmax.f32 %v821, 0.0
    %v845 = vmax.f32 %v824, 0.0
    %v846 = vmax.f32 %v827, 0.0
    %v847 = vmax.f32 %v830, 0.0
    %v848 = vmax.f32 %v833, 0.0
    %v849 = vmax.f32 %v836, 0.0
    %v850 = vmax.f32 %v839, 0.0
    %v851 = vmax.f32 %v842, 0.0
    %v852 = vadd.f32 %v785, %v844
    %v853 = vadd.f32 %v786, %v845
    %v854 = vadd.f32 %v787, %v846
    %v855 = vadd.f32 %v788, %v847
    %v856 = vadd.f32 %v789, %v848
    %v857 = vadd.f32 %v790, %v849
    %v858 = vadd.f32 %v791, %v850
    %v859 = vadd.f32 %v792, %v851
    %s860 = scalar_lea.vmem [#allocation9], 160
    %v861 = vld [vmem:[%s860] sm:$0xff]
    %v862 = vld [vmem:[%s860 + $0x8] sm:$0xff]
    %v863 = vld [vmem:[%s860 + $0x10] sm:$0xff]
    %v864 = vld [vmem:[%s860 + $0x18] sm:$0xff]
    %s865 = scalar_lea.vmem %s8, 5
    %v866 = vld [vmem:[%s865] sm:$0x1]
    %v868 = vperm.slane %v866, 0
    %v871 = vsel %vm239, %v694, 0
    %v874 = vsel %vm239, %v695, 0
    %v877 = vsel %vm239, %v696, 0
    %v880 = vsel %vm239, %v697, 0
    %v883 = vsel %vm239, %v698, 0
    %v886 = vsel %vm239, %v699, 0
    %v889 = vsel %vm239, %v700, 0
    %v892 = vsel %vm239, %v701, 0
    %894 = vmatpush.msra.mxu0 0.0
    %895 = vmatpush.msra.mxu0 0.0
    %896 = vmatpush.msra.mxu0 0.0
    %897 = vmatpush.msra.mxu0 0.0
    %898 = vmatpush.msra.mxu0 0.0
    %899 = vmatpush.msra.mxu0 0.0
    %900 = vmatpush.msra.mxu0 0.0
    %901 = vmatpush.msra.mxu0 0.0
    %902 = vmatpush.msra.mxu0 0.0
    %903 = vmatpush.msra.mxu0 0.0
    %904 = vmatpush.msra.mxu0 0.0
    %905 = vmatpush.msra.mxu0 0.0
    %906 = vmatpush.msra.mxu0 %v864
    %907 = vmatpush.msra.mxu0 %v863
    %908 = vmatpush.msra.mxu0 %v862
    %909 = vmatpush.msra.mxu0 %v861
    %910 = vmatmul.f32.gmra.mxu0 %v871
    %v911 = vpop.f32.mrf.mxu0
    %v912 = vadd.f32 %v868, %v911
    %913 = vmatmul.f32.gmra.mxu0 %v874
    %v914 = vpop.f32.mrf.mxu0
    %v915 = vadd.f32 %v868, %v914
    %916 = vmatmul.f32.gmra.mxu0 %v877
    %v917 = vpop.f32.mrf.mxu0
    %v918 = vadd.f32 %v868, %v917
    %919 = vmatmul.f32.gmra.mxu0 %v880
    %v920 = vpop.f32.mrf.mxu0
    %v921 = vadd.f32 %v868, %v920
    %922 = vmatmul.f32.gmra.mxu0 %v883
    %v923 = vpop.f32.mrf.mxu0
    %v924 = vadd.f32 %v868, %v923
    %925 = vmatmul.f32.gmra.mxu0 %v886
    %v926 = vpop.f32.mrf.mxu0
    %v927 = vadd.f32 %v868, %v926
    %928 = vmatmul.f32.gmra.mxu0 %v889
    %v929 = vpop.f32.mrf.mxu0
    %v930 = vadd.f32 %v868, %v929
    %931 = vmatmul.f32.gmra.mxu0 %v892
    %v932 = vpop.f32.mrf.mxu0
    %v933 = vadd.f32 %v868, %v932
    %934 = vdwg.mxu0
    %v935 = vmax.f32 %v912, 0.0
    %v936 = vmax.f32 %v915, 0.0
    %v937 = vmax.f32 %v918, 0.0
    %v938 = vmax.f32 %v921, 0.0
    %v939 = vmax.f32 %v924, 0.0
    %v940 = vmax.f32 %v927, 0.0
    %v941 = vmax.f32 %v930, 0.0
    %v942 = vmax.f32 %v933, 0.0
    %v943 = vadd.f32 %v852, %v935
    %v944 = vadd.f32 %v853, %v936
    %v945 = vadd.f32 %v854, %v937
    %v946 = vadd.f32 %v855, %v938
    %v947 = vadd.f32 %v856, %v939
    %v948 = vadd.f32 %v857, %v940
    %v949 = vadd.f32 %v858, %v941
    %v950 = vadd.f32 %v859, %v942
    %s951 = scalar_lea.vmem [#allocation6], 32
    %v952 = vld [vmem:[%s951] sm:$0xff]
    %v953 = vld [vmem:[%s951 + $0x8] sm:$0xff]
    %v954 = vld [vmem:[%s951 + $0x10] sm:$0xff]
    %v955 = vld [vmem:[%s951 + $0x18] sm:$0xff]
    %v957 = vsel %vm239, %v943, 0
    %v960 = vsel %vm239, %v944, 0
    %v963 = vsel %vm239, %v945, 0
    %v966 = vsel %vm239, %v946, 0
    %v969 = vsel %vm239, %v947, 0
    %v972 = vsel %vm239, %v948, 0
    %v975 = vsel %vm239, %v949, 0
    %v978 = vsel %vm239, %v950, 0
    %980 = vmatpush.msra.mxu0 0.0
    %981 = vmatpush.msra.mxu0 0.0
    %982 = vmatpush.msra.mxu0 0.0
    %983 = vmatpush.msra.mxu0 0.0
    %984 = vmatpush.msra.mxu0 0.0
    %985 = vmatpush.msra.mxu0 0.0
    %986 = vmatpush.msra.mxu0 0.0
    %987 = vmatpush.msra.mxu0 0.0
    %988 = vmatpush.msra.mxu0 0.0
    %989 = vmatpush.msra.mxu0 0.0
    %990 = vmatpush.msra.mxu0 0.0
    %991 = vmatpush.msra.mxu0 0.0
    %992 = vmatpush.msra.mxu0 %v955
    %993 = vmatpush.msra.mxu0 %v954
    %994 = vmatpush.msra.mxu0 %v953
    %995 = vmatpush.msra.mxu0 %v952
    %996 = vmatmul.f32.gmra.mxu0 %v957
    %v997 = vpop.f32.mrf.mxu0
    %v998 = vadd.f32 0.0, %v997
    %999 = vmatmul.f32.gmra.mxu0 %v960
    %v1000 = vpop.f32.mrf.mxu0
    %v1001 = vadd.f32 0.0, %v1000
    %1002 = vmatmul.f32.gmra.mxu0 %v963
    %v1003 = vpop.f32.mrf.mxu0
    %v1004 = vadd.f32 0.0, %v1003
    %1005 = vmatmul.f32.gmra.mxu0 %v966
    %v1006 = vpop.f32.mrf.mxu0
    %v1007 = vadd.f32 0.0, %v1006
    %1008 = vmatmul.f32.gmra.mxu0 %v969
    %v1009 = vpop.f32.mrf.mxu0
    %v1010 = vadd.f32 0.0, %v1009
    %1011 = vmatmul.f32.gmra.mxu0 %v972
    %v1012 = vpop.f32.mrf.mxu0
    %v1013 = vadd.f32 0.0, %v1012
    %1014 = vmatmul.f32.gmra.mxu0 %v975
    %v1015 = vpop.f32.mrf.mxu0
    %v1016 = vadd.f32 0.0, %v1015
    %1017 = vmatmul.f32.gmra.mxu0 %v978
    %v1018 = vpop.f32.mrf.mxu0
    %v1019 = vadd.f32 0.0, %v1018
    %1020 = vdwg.mxu0
    %s1021 = scalar_lea.vmem [#allocation8], 1
    %v1022 = vld [vmem:[%s1021] sm:$0x1]
    %v1024 = vperm.slane %v1022, 0
    %1026 = vmatpush.msra.mxu0 0.0
    %1027 = vmatpush.msra.mxu0 0.0
    %1028 = vmatpush.msra.mxu0 0.0
    %1029 = vmatpush.msra.mxu0 0.0
    %1030 = vmatpush.msra.mxu0 0.0
    %1031 = vmatpush.msra.mxu0 0.0
    %1032 = vmatpush.msra.mxu0 0.0
    %1033 = vmatpush.msra.mxu0 0.0
    %1034 = vmatpush.msra.mxu0 %v1019
    %1035 = vmatpush.msra.mxu0 %v1016
    %1036 = vmatpush.msra.mxu0 %v1013
    %1037 = vmatpush.msra.mxu0 %v1010
    %1038 = vmatpush.msra.mxu0 %v1007
    %1039 = vmatpush.msra.mxu0 %v1004
    %1040 = vmatpush.msra.mxu0 %v1001
    %1041 = vmatpush.msra.mxu0 %v998
    %1042 = vmatmul.f32.gmra.mxu0 %v538
    %v1043 = vpop.f32.mrf.mxu0
    %v1044 = vadd.f32 %v1024, %v1043
    %1045 = vmatmul.f32.gmra.mxu0 %v541
    %v1046 = vpop.f32.mrf.mxu0
    %v1047 = vadd.f32 %v1024, %v1046
    %1048 = vmatmul.f32.gmra.mxu0 %v544
    %v1049 = vpop.f32.mrf.mxu0
    %v1050 = vadd.f32 %v1024, %v1049
    %1051 = vmatmul.f32.gmra.mxu0 %v547
    %v1052 = vpop.f32.mrf.mxu0
    %v1053 = vadd.f32 %v1024, %v1052
    %1054 = vmatmul.f32.gmra.mxu0 %v550
    %v1055 = vpop.f32.mrf.mxu0
    %v1056 = vadd.f32 %v1024, %v1055
    %1057 = vmatmul.f32.gmra.mxu0 %v553
    %v1058 = vpop.f32.mrf.mxu0
    %v1059 = vadd.f32 %v1024, %v1058
    %1060 = vmatmul.f32.gmra.mxu0 %v556
    %v1061 = vpop.f32.mrf.mxu0
    %v1062 = vadd.f32 %v1024, %v1061
    %1063 = vmatmul.f32.gmra.mxu0 %v559
    %v1064 = vpop.f32.mrf.mxu0
    %v1065 = vadd.f32 %v1024, %v1064
    %1066 = vdwg.mxu0
    %vm1067 = vcmp.gt.f32.partialorder %v1044, 0.0
    %vm1068 = vcmp.gt.f32.partialorder %v1047, 0.0
    %vm1069 = vcmp.gt.f32.partialorder %v1050, 0.0
    %vm1070 = vcmp.gt.f32.partialorder %v1053, 0.0
    %vm1071 = vcmp.gt.f32.partialorder %v1056, 0.0
    %vm1072 = vcmp.gt.f32.partialorder %v1059, 0.0
    %vm1073 = vcmp.gt.f32.partialorder %v1062, 0.0
    %vm1074 = vcmp.gt.f32.partialorder %v1065, 0.0
    %v1075 = vmin.f32 %v1044, 0.0
    %v1076 = vmin.f32 %v1047, 0.0
    %v1077 = vmin.f32 %v1050, 0.0
    %v1078 = vmin.f32 %v1053, 0.0
    %v1079 = vmin.f32 %v1056, 0.0
    %v1080 = vmin.f32 %v1059, 0.0
    %v1081 = vmin.f32 %v1062, 0.0
    %v1082 = vmin.f32 %v1065, 0.0
    %v1083 = vmul.f32 %v1075, 1.442695
    %v1084 = vpow.pop %v1083
    %v1085 = vmul.f32 %v1076, 1.442695
    %v1086 = vpow.pop %v1085
    %v1087 = vmul.f32 %v1077, 1.442695
    %v1088 = vpow.pop %v1087
    %v1089 = vmul.f32 %v1078, 1.442695
    %v1090 = vpow.pop %v1089
    %v1091 = vmul.f32 %v1079, 1.442695
    %v1092 = vpow.pop %v1091
    %v1093 = vmul.f32 %v1080, 1.442695
    %v1094 = vpow.pop %v1093
    %v1095 = vmul.f32 %v1081, 1.442695
    %v1096 = vpow.pop %v1095
    %v1097 = vmul.f32 %v1082, 1.442695
    %v1098 = vpow.pop %v1097
    %v1099 = vsub.f32 %v1084, 1.0
    %v1100 = vsub.f32 %v1086, 1.0
    %v1101 = vsub.f32 %v1088, 1.0
    %v1102 = vsub.f32 %v1090, 1.0
    %v1103 = vsub.f32 %v1092, 1.0
    %v1104 = vsub.f32 %v1094, 1.0
    %v1105 = vsub.f32 %v1096, 1.0
    %v1106 = vsub.f32 %v1098, 1.0
    %v1107 = vsel %vm1067, %v1044, %v1099
    %v1108 = vsel %vm1068, %v1047, %v1100
    %v1109 = vsel %vm1069, %v1050, %v1101
    %v1110 = vsel %vm1070, %v1053, %v1102
    %v1111 = vsel %vm1071, %v1056, %v1103
    %v1112 = vsel %vm1072, %v1059, %v1104
    %v1113 = vsel %vm1073, %v1062, %v1105
    %v1114 = vsel %vm1074, %v1065, %v1106
    %s1115 = sld [smem:[#allocation2 + $0x3]]
    %v1116 = vstv %s1115
    %v1117 = vmul.f32 %v190, %v1116
    %v1118 = vmul.f32 %v193, %v1116
    %v1119 = vmul.f32 %v196, %v1116
    %v1120 = vmul.f32 %v199, %v1116
    %v1121 = vmul.f32 %v202, %v1116
    %v1122 = vmul.f32 %v205, %v1116
    %v1123 = vmul.f32 %v208, %v1116
    %v1124 = vmul.f32 %v211, %v1116
    %s1125 = sld [smem:[#allocation2 + $0x4]]
    %v1126 = vstv %s1125
    %v1127 = vmul.f32 %v642, %v1126
    %v1128 = vmul.f32 %v643, %v1126
    %v1129 = vmul.f32 %v644, %v1126
    %v1130 = vmul.f32 %v645, %v1126
    %v1131 = vmul.f32 %v646, %v1126
    %v1132 = vmul.f32 %v647, %v1126
    %v1133 = vmul.f32 %v648, %v1126
    %v1134 = vmul.f32 %v649, %v1126
    %v1135 = vadd.f32 %v1117, %v1127
    %v1136 = vadd.f32 %v1118, %v1128
    %v1137 = vadd.f32 %v1119, %v1129
    %v1138 = vadd.f32 %v1120, %v1130
    %v1139 = vadd.f32 %v1121, %v1131
    %v1140 = vadd.f32 %v1122, %v1132
    %v1141 = vadd.f32 %v1123, %v1133
    %v1142 = vadd.f32 %v1124, %v1134
    %v1143 = vmax.f32 %v1117, %v1127
    %v1144 = vmax.f32 %v1118, %v1128
    %v1145 = vmax.f32 %v1119, %v1129
    %v1146 = vmax.f32 %v1120, %v1130
    %v1147 = vmax.f32 %v1121, %v1131
    %v1148 = vmax.f32 %v1122, %v1132
    %v1149 = vmax.f32 %v1123, %v1133
    %v1150 = vmax.f32 %v1124, %v1134
    %s1151 = sld [smem:[#allocation2 + $0x5]]
    %v1152 = vstv %s1151
    %v1153 = vmul.f32 %v1107, %v1152
    %v1154 = vmul.f32 %v1108, %v1152
    %v1155 = vmul.f32 %v1109, %v1152
    %v1156 = vmul.f32 %v1110, %v1152
    %v1157 = vmul.f32 %v1111, %v1152
    %v1158 = vmul.f32 %v1112, %v1152
    %v1159 = vmul.f32 %v1113, %v1152
    %v1160 = vmul.f32 %v1114, %v1152
    %v1161 = vadd.f32 %v1135, %v1153
    %v1162 = vadd.f32 %v1136, %v1154
    %v1163 = vadd.f32 %v1137, %v1155
    %v1164 = vadd.f32 %v1138, %v1156
    %v1165 = vadd.f32 %v1139, %v1157
    %v1166 = vadd.f32 %v1140, %v1158
    %v1167 = vadd.f32 %v1141, %v1159
    %v1168 = vadd.f32 %v1142, %v1160
    %v1169 = vmax.f32 %v1143, %v1153
    %v1170 = vmax.f32 %v1144, %v1154
    %v1171 = vmax.f32 %v1145, %v1155
    %v1172 = vmax.f32 %v1146, %v1156
    %v1173 = vmax.f32 %v1147, %v1157
    %v1174 = vmax.f32 %v1148, %v1158
    %v1175 = vmax.f32 %v1149, %v1159
    %v1176 = vmax.f32 %v1150, %v1160
    %v1177 = vmax.f32 %v1161, 0.0
    %v1178 = vmax.f32 %v1162, 0.0
    %v1179 = vmax.f32 %v1163, 0.0
    %v1180 = vmax.f32 %v1164, 0.0
    %v1181 = vmax.f32 %v1165, 0.0
    %v1182 = vmax.f32 %v1166, 0.0
    %v1183 = vmax.f32 %v1167, 0.0
    %v1184 = vmax.f32 %v1168, 0.0
    %v1185 = vmax.f32 %v1169, 0.0
    %v1186 = vmax.f32 %v1170, 0.0
    %v1187 = vmax.f32 %v1171, 0.0
    %v1188 = vmax.f32 %v1172, 0.0
    %v1189 = vmax.f32 %v1173, 0.0
    %v1190 = vmax.f32 %v1174, 0.0
    %v1191 = vmax.f32 %v1175, 0.0
    %v1192 = vmax.f32 %v1176, 0.0
    %s1193 = scalar_lea.vmem [#allocation9], 192
    %v1194 = vld [vmem:[%s1193] sm:$0xff]
    %v1195 = vld [vmem:[%s1193 + $0x8] sm:$0xff]
    %v1196 = vld [vmem:[%s1193 + $0x10] sm:$0xff]
    %v1197 = vld [vmem:[%s1193 + $0x18] sm:$0xff]
    %s1198 = scalar_lea.vmem %s8, 6
    %v1199 = vld [vmem:[%s1198] sm:$0x1]
    %v1201 = vperm.slane %v1199, 0
    %v1204 = vsel %vm239, %v1177, 0
    %v1207 = vsel %vm239, %v1178, 0
    %v1210 = vsel %vm239, %v1179, 0
    %v1213 = vsel %vm239, %v1180, 0
    %v1216 = vsel %vm239, %v1181, 0
    %v1219 = vsel %vm239, %v1182, 0
    %v1222 = vsel %vm239, %v1183, 0
    %v1225 = vsel %vm239, %v1184, 0
    %1227 = vmatpush.msra.mxu0 0.0
    %1228 = vmatpush.msra.mxu0 0.0
    %1229 = vmatpush.msra.mxu0 0.0
    %1230 = vmatpush.msra.mxu0 0.0
    %1231 = vmatpush.msra.mxu0 0.0
    %1232 = vmatpush.msra.mxu0 0.0
    %1233 = vmatpush.msra.mxu0 0.0
    %1234 = vmatpush.msra.mxu0 0.0
    %1235 = vmatpush.msra.mxu0 0.0
    %1236 = vmatpush.msra.mxu0 0.0
    %1237 = vmatpush.msra.mxu0 0.0
    %1238 = vmatpush.msra.mxu0 0.0
    %1239 = vmatpush.msra.mxu0 %v1197
    %1240 = vmatpush.msra.mxu0 %v1196
    %1241 = vmatpush.msra.mxu0 %v1195
    %1242 = vmatpush.msra.mxu0 %v1194
    %1243 = vmatmul.f32.gmra.mxu0 %v1204
    %v1244 = vpop.f32.mrf.mxu0
    %v1245 = vadd.f32 %v1201, %v1244
    %1246 = vmatmul.f32.gmra.mxu0 %v1207
    %v1247 = vpop.f32.mrf.mxu0
    %v1248 = vadd.f32 %v1201, %v1247
    %1249 = vmatmul.f32.gmra.mxu0 %v1210
    %v1250 = vpop.f32.mrf.mxu0
    %v1251 = vadd.f32 %v1201, %v1250
    %1252 = vmatmul.f32.gmra.mxu0 %v1213
    %v1253 = vpop.f32.mrf.mxu0
    %v1254 = vadd.f32 %v1201, %v1253
    %1255 = vmatmul.f32.gmra.mxu0 %v1216
    %v1256 = vpop.f32.mrf.mxu0
    %v1257 = vadd.f32 %v1201, %v1256
    %1258 = vmatmul.f32.gmra.mxu0 %v1219
    %v1259 = vpop.f32.mrf.mxu0
    %v1260 = vadd.f32 %v1201, %v1259
    %1261 = vmatmul.f32.gmra.mxu0 %v1222
    %v1262 = vpop.f32.mrf.mxu0
    %v1263 = vadd.f32 %v1201, %v1262
    %1264 = vmatmul.f32.gmra.mxu0 %v1225
    %v1265 = vpop.f32.mrf.mxu0
    %v1266 = vadd.f32 %v1201, %v1265
    %1267 = vdwg.mxu0
    %v1268 = vmax.f32 %v1245, 0.0
    %v1269 = vmax.f32 %v1248, 0.0
    %v1270 = vmax.f32 %v1251, 0.0
    %v1271 = vmax.f32 %v1254, 0.0
    %v1272 = vmax.f32 %v1257, 0.0
    %v1273 = vmax.f32 %v1260, 0.0
    %v1274 = vmax.f32 %v1263, 0.0
    %v1275 = vmax.f32 %v1266, 0.0
    %v1276 = vadd.f32 %v1268, 0.0
    %v1277 = vadd.f32 %v1269, 0.0
    %v1278 = vadd.f32 %v1270, 0.0
    %v1279 = vadd.f32 %v1271, 0.0
    %v1280 = vadd.f32 %v1272, 0.0
    %v1281 = vadd.f32 %v1273, 0.0
    %v1282 = vadd.f32 %v1274, 0.0
    %v1283 = vadd.f32 %v1275, 0.0
    %s1284 = scalar_lea.vmem [#allocation9], 224
    %v1285 = vld [vmem:[%s1284] sm:$0xff]
    %v1286 = vld [vmem:[%s1284 + $0x8] sm:$0xff]
    %v1287 = vld [vmem:[%s1284 + $0x10] sm:$0xff]
    %v1288 = vld [vmem:[%s1284 + $0x18] sm:$0xff]
    %s1289 = scalar_lea.vmem %s8, 7
    %v1290 = vld [vmem:[%s1289] sm:$0x1]
    %v1292 = vperm.slane %v1290, 0
    %1294 = vmatpush.msra.mxu0 0.0
    %1295 = vmatpush.msra.mxu0 0.0
    %1296 = vmatpush.msra.mxu0 0.0
    %1297 = vmatpush.msra.mxu0 0.0
    %1298 = vmatpush.msra.mxu0 0.0
    %1299 = vmatpush.msra.mxu0 0.0
    %1300 = vmatpush.msra.mxu0 0.0
    %1301 = vmatpush.msra.mxu0 0.0
    %1302 = vmatpush.msra.mxu0 0.0
    %1303 = vmatpush.msra.mxu0 0.0
    %1304 = vmatpush.msra.mxu0 0.0
    %1305 = vmatpush.msra.mxu0 0.0
    %1306 = vmatpush.msra.mxu0 %v1288
    %1307 = vmatpush.msra.mxu0 %v1287
    %1308 = vmatpush.msra.mxu0 %v1286
    %1309 = vmatpush.msra.mxu0 %v1285
    %1310 = vmatmul.f32.gmra.mxu0 %v1204
    %v1311 = vpop.f32.mrf.mxu0
    %v1312 = vadd.f32 %v1292, %v1311
    %1313 = vmatmul.f32.gmra.mxu0 %v1207
    %v1314 = vpop.f32.mrf.mxu0
    %v1315 = vadd.f32 %v1292, %v1314
    %1316 = vmatmul.f32.gmra.mxu0 %v1210
    %v1317 = vpop.f32.mrf.mxu0
    %v1318 = vadd.f32 %v1292, %v1317
    %1319 = vmatmul.f32.gmra.mxu0 %v1213
    %v1320 = vpop.f32.mrf.mxu0
    %v1321 = vadd.f32 %v1292, %v1320
    %1322 = vmatmul.f32.gmra.mxu0 %v1216
    %v1323 = vpop.f32.mrf.mxu0
    %v1324 = vadd.f32 %v1292, %v1323
    %1325 = vmatmul.f32.gmra.mxu0 %v1219
    %v1326 = vpop.f32.mrf.mxu0
    %v1327 = vadd.f32 %v1292, %v1326
    %1328 = vmatmul.f32.gmra.mxu0 %v1222
    %v1329 = vpop.f32.mrf.mxu0
    %v1330 = vadd.f32 %v1292, %v1329
    %1331 = vmatmul.f32.gmra.mxu0 %v1225
    %v1332 = vpop.f32.mrf.mxu0
    %v1333 = vadd.f32 %v1292, %v1332
    %1334 = vdwg.mxu0
    %v1335 = vmax.f32 %v1312, 0.0
    %v1336 = vmax.f32 %v1315, 0.0
    %v1337 = vmax.f32 %v1318, 0.0
    %v1338 = vmax.f32 %v1321, 0.0
    %v1339 = vmax.f32 %v1324, 0.0
    %v1340 = vmax.f32 %v1327, 0.0
    %v1341 = vmax.f32 %v1330, 0.0
    %v1342 = vmax.f32 %v1333, 0.0
    %v1343 = vadd.f32 %v1276, %v1335
    %v1344 = vadd.f32 %v1277, %v1336
    %v1345 = vadd.f32 %v1278, %v1337
    %v1346 = vadd.f32 %v1279, %v1338
    %v1347 = vadd.f32 %v1280, %v1339
    %v1348 = vadd.f32 %v1281, %v1340
    %v1349 = vadd.f32 %v1282, %v1341
    %v1350 = vadd.f32 %v1283, %v1342
    %s1351 = scalar_lea.vmem [#allocation9], 256
    %v1352 = vld [vmem:[%s1351] sm:$0xff]
    %v1353 = vld [vmem:[%s1351 + $0x8] sm:$0xff]
    %v1354 = vld [vmem:[%s1351 + $0x10] sm:$0xff]
    %v1355 = vld [vmem:[%s1351 + $0x18] sm:$0xff]
    %s1356 = scalar_lea.vmem %s8, 8
    %v1357 = vld [vmem:[%s1356] sm:$0x1]
    %v1359 = vperm.slane %v1357, 0
    %v1362 = vsel %vm239, %v1185, 0
    %v1365 = vsel %vm239, %v1186, 0
    %v1368 = vsel %vm239, %v1187, 0
    %v1371 = vsel %vm239, %v1188, 0
    %v1374 = vsel %vm239, %v1189, 0
    %v1377 = vsel %vm239, %v1190, 0
    %v1380 = vsel %vm239, %v1191, 0
    %v1383 = vsel %vm239, %v1192, 0
    %1385 = vmatpush.msra.mxu0 0.0
    %1386 = vmatpush.msra.mxu0 0.0
    %1387 = vmatpush.msra.mxu0 0.0
    %1388 = vmatpush.msra.mxu0 0.0
    %1389 = vmatpush.msra.mxu0 0.0
    %1390 = vmatpush.msra.mxu0 0.0
    %1391 = vmatpush.msra.mxu0 0.0
    %1392 = vmatpush.msra.mxu0 0.0
    %1393 = vmatpush.msra.mxu0 0.0
    %1394 = vmatpush.msra.mxu0 0.0
    %1395 = vmatpush.msra.mxu0 0.0
    %1396 = vmatpush.msra.mxu0 0.0
    %1397 = vmatpush.msra.mxu0 %v1355
    %1398 = vmatpush.msra.mxu0 %v1354
    %1399 = vmatpush.msra.mxu0 %v1353
    %1400 = vmatpush.msra.mxu0 %v1352
    %1401 = vmatmul.f32.gmra.mxu0 %v1362
    %v1402 = vpop.f32.mrf.mxu0
    %v1403 = vadd.f32 %v1359, %v1402
    %1404 = vmatmul.f32.gmra.mxu0 %v1365
    %v1405 = vpop.f32.mrf.mxu0
    %v1406 = vadd.f32 %v1359, %v1405
    %1407 = vmatmul.f32.gmra.mxu0 %v1368
    %v1408 = vpop.f32.mrf.mxu0
    %v1409 = vadd.f32 %v1359, %v1408
    %1410 = vmatmul.f32.gmra.mxu0 %v1371
    %v1411 = vpop.f32.mrf.mxu0
    %v1412 = vadd.f32 %v1359, %v1411
    %1413 = vmatmul.f32.gmra.mxu0 %v1374
    %v1414 = vpop.f32.mrf.mxu0
    %v1415 = vadd.f32 %v1359, %v1414
    %1416 = vmatmul.f32.gmra.mxu0 %v1377
    %v1417 = vpop.f32.mrf.mxu0
    %v1418 = vadd.f32 %v1359, %v1417
    %1419 = vmatmul.f32.gmra.mxu0 %v1380
    %v1420 = vpop.f32.mrf.mxu0
    %v1421 = vadd.f32 %v1359, %v1420
    %1422 = vmatmul.f32.gmra.mxu0 %v1383
    %v1423 = vpop.f32.mrf.mxu0
    %v1424 = vadd.f32 %v1359, %v1423
    %1425 = vdwg.mxu0
    %v1426 = vmax.f32 %v1403, 0.0
    %v1427 = vmax.f32 %v1406, 0.0
    %v1428 = vmax.f32 %v1409, 0.0
    %v1429 = vmax.f32 %v1412, 0.0
    %v1430 = vmax.f32 %v1415, 0.0
    %v1431 = vmax.f32 %v1418, 0.0
    %v1432 = vmax.f32 %v1421, 0.0
    %v1433 = vmax.f32 %v1424, 0.0
    %v1434 = vadd.f32 %v1343, %v1426
    %v1435 = vadd.f32 %v1344, %v1427
    %v1436 = vadd.f32 %v1345, %v1428
    %v1437 = vadd.f32 %v1346, %v1429
    %v1438 = vadd.f32 %v1347, %v1430
    %v1439 = vadd.f32 %v1348, %v1431
    %v1440 = vadd.f32 %v1349, %v1432
    %v1441 = vadd.f32 %v1350, %v1433
    %v1442 = vld [vmem:[%s9] sm:$0xff]
    %v1443 = vld [vmem:[%s9 + $0x8] sm:$0xff]
    %v1444 = vld [vmem:[%s9 + $0x10] sm:$0xff]
    %v1445 = vld [vmem:[%s9 + $0x18] sm:$0xff]
    %v1446 = vld [vmem:[#allocation11] sm:$0x1]
    %v1448 = vperm.slane %v1446, 0
    %v1451 = vsel %vm239, %v1434, 0
    %v1454 = vsel %vm239, %v1435, 0
    %v1457 = vsel %vm239, %v1436, 0
    %v1460 = vsel %vm239, %v1437, 0
    %v1463 = vsel %vm239, %v1438, 0
    %v1466 = vsel %vm239, %v1439, 0
    %v1469 = vsel %vm239, %v1440, 0
    %v1472 = vsel %vm239, %v1441, 0
    %1474 = vmatpush.msra.mxu0 0.0
    %1475 = vmatpush.msra.mxu0 0.0
    %1476 = vmatpush.msra.mxu0 0.0
    %1477 = vmatpush.msra.mxu0 0.0
    %1478 = vmatpush.msra.mxu0 0.0
    %1479 = vmatpush.msra.mxu0 0.0
    %1480 = vmatpush.msra.mxu0 0.0
    %1481 = vmatpush.msra.mxu0 0.0
    %1482 = vmatpush.msra.mxu0 0.0
    %1483 = vmatpush.msra.mxu0 0.0
    %1484 = vmatpush.msra.mxu0 0.0
    %1485 = vmatpush.msra.mxu0 0.0
    %1486 = vmatpush.msra.mxu0 %v1445
    %1487 = vmatpush.msra.mxu0 %v1444
    %1488 = vmatpush.msra.mxu0 %v1443
    %1489 = vmatpush.msra.mxu0 %v1442
    %1490 = vmatmul.f32.gmra.mxu0 %v1451
    %v1491 = vpop.f32.mrf.mxu0
    %v1492 = vadd.f32 %v1448, %v1491
    %1493 = vmatmul.f32.gmra.mxu0 %v1454
    %v1494 = vpop.f32.mrf.mxu0
    %v1495 = vadd.f32 %v1448, %v1494
    %1496 = vmatmul.f32.gmra.mxu0 %v1457
    %v1497 = vpop.f32.mrf.mxu0
    %v1498 = vadd.f32 %v1448, %v1497
    %1499 = vmatmul.f32.gmra.mxu0 %v1460
    %v1500 = vpop.f32.mrf.mxu0
    %v1501 = vadd.f32 %v1448, %v1500
    %1502 = vmatmul.f32.gmra.mxu0 %v1463
    %v1503 = vpop.f32.mrf.mxu0
    %v1504 = vadd.f32 %v1448, %v1503
    %1505 = vmatmul.f32.gmra.mxu0 %v1466
    %v1506 = vpop.f32.mrf.mxu0
    %v1507 = vadd.f32 %v1448, %v1506
    %1508 = vmatmul.f32.gmra.mxu0 %v1469
    %v1509 = vpop.f32.mrf.mxu0
    %v1510 = vadd.f32 %v1448, %v1509
    %1511 = vmatmul.f32.gmra.mxu0 %v1472
    %v1512 = vpop.f32.mrf.mxu0
    %v1513 = vadd.f32 %v1448, %v1512
    %1514 = vdwg.mxu0
    %v1515 = vmax.f32 %v1492, 0.0
    %v1516 = vmax.f32 %v1495, 0.0
    %v1517 = vmax.f32 %v1498, 0.0
    %v1518 = vmax.f32 %v1501, 0.0
    %v1519 = vmax.f32 %v1504, 0.0
    %v1520 = vmax.f32 %v1507, 0.0
    %v1521 = vmax.f32 %v1510, 0.0
    %v1522 = vmax.f32 %v1513, 0.0
    %v1523 = vld [vmem:[%s11] sm:$0xff]
    %v1524 = vld [vmem:[%s11 + $0x8] sm:$0xff]
    %v1525 = vld [vmem:[%s11 + $0x10] sm:$0xff]
    %v1526 = vld [vmem:[%s11 + $0x18] sm:$0xff]
    %v1527 = vld [vmem:[%s12] sm:$0x1]
    %v1529 = vperm.slane %v1527, 0
    %v1532 = vsel %vm239, %v1515, 0
    %v1535 = vsel %vm239, %v1516, 0
    %v1538 = vsel %vm239, %v1517, 0
    %v1541 = vsel %vm239, %v1518, 0
    %v1544 = vsel %vm239, %v1519, 0
    %v1547 = vsel %vm239, %v1520, 0
    %v1550 = vsel %vm239, %v1521, 0
    %v1553 = vsel %vm239, %v1522, 0
    %1555 = vmatpush.msra.mxu0 0.0
    %1556 = vmatpush.msra.mxu0 0.0
    %1557 = vmatpush.msra.mxu0 0.0
    %1558 = vmatpush.msra.mxu0 0.0
    %1559 = vmatpush.msra.mxu0 0.0
    %1560 = vmatpush.msra.mxu0 0.0
    %1561 = vmatpush.msra.mxu0 0.0
    %1562 = vmatpush.msra.mxu0 0.0
    %1563 = vmatpush.msra.mxu0 0.0
    %1564 = vmatpush.msra.mxu0 0.0
    %1565 = vmatpush.msra.mxu0 0.0
    %1566 = vmatpush.msra.mxu0 0.0
    %1567 = vmatpush.msra.mxu0 %v1526
    %1568 = vmatpush.msra.mxu0 %v1525
    %1569 = vmatpush.msra.mxu0 %v1524
    %1570 = vmatpush.msra.mxu0 %v1523
    %1571 = vmatmul.f32.gmra.mxu0 %v1532
    %v1572 = vpop.f32.mrf.mxu0
    %v1573 = vadd.f32 %v1529, %v1572
    %1574 = vmatmul.f32.gmra.mxu0 %v1535
    %v1575 = vpop.f32.mrf.mxu0
    %v1576 = vadd.f32 %v1529, %v1575
    %1577 = vmatmul.f32.gmra.mxu0 %v1538
    %v1578 = vpop.f32.mrf.mxu0
    %v1579 = vadd.f32 %v1529, %v1578
    %1580 = vmatmul.f32.gmra.mxu0 %v1541
    %v1581 = vpop.f32.mrf.mxu0
    %v1582 = vadd.f32 %v1529, %v1581
    %1583 = vmatmul.f32.gmra.mxu0 %v1544
    %v1584 = vpop.f32.mrf.mxu0
    %v1585 = vadd.f32 %v1529, %v1584
    %1586 = vmatmul.f32.gmra.mxu0 %v1547
    %v1587 = vpop.f32.mrf.mxu0
    %v1588 = vadd.f32 %v1529, %v1587
    %1589 = vmatmul.f32.gmra.mxu0 %v1550
    %v1590 = vpop.f32.mrf.mxu0
    %v1591 = vadd.f32 %v1529, %v1590
    %1592 = vmatmul.f32.gmra.mxu0 %v1553
    %v1593 = vpop.f32.mrf.mxu0
    %v1594 = vadd.f32 %v1529, %v1593
    %1595 = vdwg.mxu0
    %vm1596 = vcmask 64512
    %1597 = vst.msk [vmem:[%s13] sm:$0xff] %vm1596, %v1573
    %1598 = vst.msk [vmem:[%s13 + $0x8] sm:$0xff] %vm1596, %v1576
    %1599 = vst.msk [vmem:[%s13 + $0x10] sm:$0xff] %vm1596, %v1579
    %1600 = vst.msk [vmem:[%s13 + $0x18] sm:$0xff] %vm1596, %v1582
    %1601 = vst.msk [vmem:[%s13 + $0x20] sm:$0xff] %vm1596, %v1585
    %1602 = vst.msk [vmem:[%s13 + $0x28] sm:$0xff] %vm1596, %v1588
    %1603 = vst.msk [vmem:[%s13 + $0x30] sm:$0xff] %vm1596, %v1591
    %1604 = vst.msk [vmem:[%s13 + $0x38] sm:$0xff] %vm1596, %v1594
    // Predicated region
    $region78: #{tpu_custom_call.1} parent=1 // pred_check
      _
    $region79: #{tpu_custom_call.1} parent=1 // pred_check_branch
      %1606 = sbr.rel (0) target = $region81
    $region80: #{tpu_custom_call.1} parent=1 // pred_region
      _
    $region81: #{tpu_custom_call.1} parent=1 // pred_fallthru
      _
    // Predicated region
    $region82: #{tpu_custom_call.1} parent=1 // pred_check
      _
    $region83: #{tpu_custom_call.1} parent=1 // pred_check_branch
      %1608 = sbr.rel (0) target = $region85
    $region84: #{tpu_custom_call.1} parent=1 // pred_region
      _
    $region85: #{tpu_custom_call.1} parent=1 // pred_fallthru
      _
    %1609 = vsyncpa [#allocation3], 1
    %1610 = vsyncpa [#allocation7], 1
    %1611 = vsyncpa [#allocation10], 1
    %1612 = vsyncpa [#allocation4], 1

</llo_original>
